<compile_context>
chip_gen: v5e
topology: v5e:2x2
jax: 0.10.0
libtpu: 0.0.40
codegen_flags: <defaults>
</compile_context>

<pallas_src>
import functools

import jax
import jax.numpy as jnp
from jax.experimental import pallas as pl
from jax.experimental.pallas import tpu as pltpu


# ------------------------------ fused kernel --------------------------------

def _gnn_kernel(
        # scalar prefetch (SMEM)
        row_ref, col_ref,                      # (E_pad,) int32
        # resident VMEM inputs
        x_ref,                                 # (N, IN)
        win_ref, bin_ref,                      # input net: (IN, CH), (1, CH)
        we1_ch_ref, we1_cx_ref, be1_ref,       # edge l1, m[col] part + bias
        we1_rh_ref, we1_rx_ref,                # edge l1, m[row] part
        w2_ref, b2_ref,                        # edge l2 head: (CH, C), (1, C)
        bcast_ref,                             # (C, CH) class->lane-block bcast
        wn1_ih_ref, wn1_ix_ref,                # node l1, mi slot
        wn1_oh_ref, wn1_ox_ref,                # node l1, mo slot
        wn1_mh_ref, wn1_mx_ref, bn1_ref,       # node l1, m slot + bias
        wn2_ref, bn2_ref,                      # node l2: (CH, CH), (1, CH)
        # output block
        out_ref,                               # (TE, C)
        # VMEM scratch (persistent across the whole grid)
        eproj_c, eproj_r,                      # (N, CH) edge-l1 projections
        nproj_i, nproj_o, mproj_m,             # (N, CH) node-l1 projections
        acc_i, acc_o,                          # (N, CH) scatter accumulators
        b_scr,                                 # (TE, CH) per-tile workspace
        *, n_edges, tile_edges, n_tiles, n_iters):
    t = pl.program_id(0)                       # message-passing pass
    s = pl.program_id(1)                       # edge tile, or node step (== n_tiles)
    n_pass = n_iters + 1

    def dot(a, b):
        return jnp.dot(a, b, preferred_element_type=jnp.float32)

    # Per-node projections of the state m = [mh | x]; recomputed whenever mh
    # changes (init + every node step).  Biases be1 / bn1 are folded in.
    def write_edge_proj(mh):
        x = x_ref[...]
        eproj_c[...] = dot(mh, we1_ch_ref[...]) + dot(x, we1_cx_ref[...]) + be1_ref[...]
        eproj_r[...] = dot(mh, we1_rh_ref[...]) + dot(x, we1_rx_ref[...])

    def write_node_proj(mh):
        x = x_ref[...]
        nproj_i[...] = dot(mh, wn1_ih_ref[...]) + dot(x, wn1_ix_ref[...])
        nproj_o[...] = dot(mh, wn1_oh_ref[...]) + dot(x, wn1_ox_ref[...])
        mproj_m[...] = dot(mh, wn1_mh_ref[...]) + dot(x, wn1_mx_ref[...]) + bn1_ref[...]
        # accumulators for the next pass' scatter (no start-of-pass zero burst)
        acc_i[...] = jnp.zeros_like(acc_i)
        acc_o[...] = jnp.zeros_like(acc_o)

    # ---- input network (once, batched over all nodes and classes) ----------
    @pl.when((t == 0) & (s == 0))
    def _init():
        mh0 = jnp.tanh(dot(x_ref[...], win_ref[...]) + bin_ref[...])   # (N, CH)
        write_edge_proj(mh0)
        if n_iters >= 1:
            write_node_proj(mh0)

    # ---- edge phase: one tile of `tile_edges` edges -------------------------
    @pl.when(s < n_tiles)
    def _edge():
        base = s * tile_edges

        # Gather: the edge-l1 pre-activation is just a sum of two projected rows.
        @pl.loop(0, tile_edges)
        def _gather(e):
            g = base + e
            r = row_ref[g]
            c = col_ref[g]
            b_scr[pl.ds(e, 1), :] = (eproj_c[pl.ds(c, 1), :] +
                                     eproj_r[pl.ds(r, 1), :])

        # Batched head over the whole tile: tanh -> (CH->C) matmul -> tanh -> softmax(C).
        h1 = jnp.tanh(b_scr[...])                                      # (TE, CH)
        logits = jnp.tanh(dot(h1, w2_ref[...]) + b2_ref[...])          # (TE, C)
        mx = jnp.max(logits, axis=-1, keepdims=True)
        ex = jnp.exp(logits - mx)
        # NOTE: pl.reciprocal(..., approx=True) would move this to the (idle)
        # EUP slot at ~1e-3 accuracy cost; kept exact to match the reference.
        attn = ex * pl.reciprocal(jnp.sum(ex, axis=-1, keepdims=True), approx=False)
        out_ref[...] = attn                                            # (TE, C)

        # Broadcast attn over the H lanes of each class block (tiny MXU matmul)
        # and reuse b_scr to hold it for the scatter loop.
        b_scr[...] = dot(attn, bcast_ref[...])                         # (TE, CH)

        # Fused attention-weighted scatter_add, in node-l1-projected space.
        # Skipped on the final edge-only pass.
        @pl.when(t < n_pass - 1)
        def _scatter():
            @pl.loop(0, tile_edges)
            def _(e):
                g = base + e

                @pl.when(g < n_edges)            # skip padded edges
                def _():
                    r = row_ref[g]
                    c = col_ref[g]
                    a = b_scr[pl.ds(e, 1), :]
                    acc_i[pl.ds(c, 1), :] = (acc_i[pl.ds(c, 1), :] +
                                             a * nproj_i[pl.ds(r, 1), :])
                    acc_o[pl.ds(r, 1), :] = (acc_o[pl.ds(r, 1), :] +
                                             a * nproj_o[pl.ds(c, 1), :])

    # ---- node phase: whole graph in one batched step (skipped on last pass) --
    @pl.when((s == n_tiles) & (t < n_pass - 1))
    def _node():
        h = jnp.tanh(acc_i[...] + acc_o[...] + mproj_m[...])           # (N, CH)
        mh_new = jnp.tanh(dot(h, wn2_ref[...]) + bn2_ref[...])         # (N, CH)
        write_edge_proj(mh_new)

        @pl.when(t < n_pass - 2)                # next pass also has a node phase
        def _():
            write_node_proj(mh_new)


# ------------------------------ parameters ----------------------------------

def init_params(key, input_dim, hidden_dim, nclasses):
    D = input_dim + hidden_dim
    keys = jax.random.split(key, 10)

    def lin(kw, kb, fan_in, fan_out):
        bound = 1.0 / (fan_in ** 0.5)
        w = jax.random.uniform(kw, (fan_in, fan_out), jnp.float32, -bound, bound)
        b = jax.random.uniform(kb, (1, fan_out), jnp.float32, -bound, bound)
        return w, b

    p = {}
    p['in_w'], p['in_b'] = lin(keys[0], keys[1], input_dim, hidden_dim)
    p['e1_w'], p['e1_b'] = lin(keys[2], keys[3], 2 * D, hidden_dim)
    p['e2_w'], p['e2_b'] = lin(keys[4], keys[5], hidden_dim, 1)   # stacks=True -> out=1
    p['n1_w'], p['n1_b'] = lin(keys[6], keys[7], 3 * D, hidden_dim)
    p['n2_w'], p['n2_b'] = lin(keys[8], keys[9], hidden_dim, hidden_dim)
    return p


# ------------------------------ forward pass ---------------------------------

def _round_up(a, b):
    return (a + b - 1) // b * b


def _padded_vmem_bytes(shape, itemsize=4):
    """Bytes of a 2-D f32 array once padded to (8, 128) tiles in VMEM."""
    r = shape[-2] if len(shape) >= 2 else 1
    c = shape[-1]
    return _round_up(r, 8) * _round_up(c, 128) * itemsize


def gnn_forward(params, x, edge_index, nclasses, hidden_dim, n_iters,
                edge_tile=128):
    N, input_dim = x.shape
    E = edge_index.shape[1]
    C, H = nclasses, hidden_dim
    CH = C * H
    D = input_dim + H

    # ---- edge tiling (TE edges per grid step, edge list padded with node 0) --
    TE = min(edge_tile, _round_up(max(E, 1), 8))
    E_pad = _round_up(max(E, 1), TE)
    n_tiles = E_pad // TE

    row = edge_index[0].astype(jnp.int32)
    col = edge_index[1].astype(jnp.int32)
    if E_pad != E:
        pad = jnp.zeros((E_pad - E,), jnp.int32)
        row = jnp.concatenate([row, pad])
        col = jnp.concatenate([col, pad])

    # ---- expand class-shared weights host-side (once) ------------------------
    eye_c = jnp.eye(C, dtype=jnp.float32)

    def block_diag(w):   # (H, O) -> (C*H, C*O): same weight on every class block
        return jnp.kron(eye_c, w.astype(jnp.float32))

    def tile_c(w):       # (K, O) -> (K, C*O): x / bias part, shared across classes
        return jnp.tile(w.astype(jnp.float32), (1, C))

    we1, wn1 = params['e1_w'], params['n1_w']
    we1_ch, we1_cx = we1[0:H], we1[H:D]                         # m[col] = [h | x]
    we1_rh, we1_rx = we1[D:D + H], we1[D + H:2 * D]             # m[row]
    wn1_ih, wn1_ix = wn1[0:H], wn1[H:D]                         # mi slot
    wn1_oh, wn1_ox = wn1[D:D + H], wn1[D + H:2 * D]             # mo slot
    wn1_mh, wn1_mx = wn1[2 * D:2 * D + H], wn1[2 * D + H:3 * D]  # m slot

    inputs = (
        x.astype(jnp.float32),                                   # (N, IN)
        tile_c(params['in_w']), tile_c(params['in_b']),          # input net
        block_diag(we1_ch), tile_c(we1_cx), tile_c(params['e1_b']),
        block_diag(we1_rh), tile_c(we1_rx),
        block_diag(params['e2_w']),                              # (CH, C) head
        tile_c(params['e2_b']),                                  # (1, C)
        block_diag(jnp.ones((1, H), jnp.float32)),               # (C, CH) bcast
        block_diag(wn1_ih), tile_c(wn1_ix),
        block_diag(wn1_oh), tile_c(wn1_ox),
        block_diag(wn1_mh), tile_c(wn1_mx), tile_c(params['n1_b']),
        block_diag(params['n2_w']), tile_c(params['n2_b']),
    )

    def resident(a):
        nd = a.ndim
        return pl.BlockSpec(a.shape, lambda *_, _nd=nd: (0,) * _nd)

    out_spec = pl.BlockSpec(
        (TE, C), lambda t, s, *_: (jnp.minimum(s, n_tiles - 1), 0))

    grid = (n_iters + 1, n_tiles + 1)
    grid_spec = pltpu.PrefetchScalarGridSpec(
        num_scalar_prefetch=2,                   # row, col indices in SMEM
        grid=grid,
        in_specs=[resident(a) for a in inputs],
        out_specs=out_spec,
        scratch_shapes=(
            [pltpu.VMEM((N, CH), jnp.float32) for _ in range(7)]   # projections + acc
            + [pltpu.VMEM((TE, CH), jnp.float32)]                  # per-tile workspace
        ),
    )

    kernel = functools.partial(
        _gnn_kernel,
        n_edges=E, tile_edges=TE, n_tiles=n_tiles, n_iters=n_iters)

    # VMEM budget: resident inputs (x2 for double buffering), out block (x2),
    # persistent scratch (x1), plus margin.
    vmem_bytes = (sum(2 * _padded_vmem_bytes(a.shape) for a in inputs)
                  + 2 * _padded_vmem_bytes((TE, C))
                  + 7 * _padded_vmem_bytes((N, CH))
                  + _padded_vmem_bytes((TE, CH))
                  + (2 << 20))
    vmem_limit = int(min(max(vmem_bytes, 32 << 20), 128 << 20))

    e = pl.pallas_call(
        kernel,
        out_shape=jax.ShapeDtypeStruct((E_pad, C), jnp.float32),
        grid_spec=grid_spec,
        compiler_params=pltpu.CompilerParams(
            # Sequential by construction (scatter_add RMW + pass dependence).
            dimension_semantics=("arbitrary", "arbitrary"),
            vmem_limit_bytes=vmem_limit),
    )(row, col, *inputs)

    return e[:E]                                 # == torch (E, C, 1).squeeze()


# ----------------------- pure-JAX reference (check) --------------------------

def reference_forward(params, x, edge_index, nclasses, hidden_dim, n_iters):
    N, input_dim = x.shape
    C = nclasses
    row, col = edge_index[0], edge_index[1]
    X = jnp.broadcast_to(x[:, None, :], (N, C, input_dim))
    H = jnp.tanh(X @ params['in_w'] + params['in_b'][0])
    m = jnp.concatenate([H, X], axis=-1)

    def edge_net(m):
        B = jnp.concatenate([m[col], m[row]], axis=-1)
        h1 = jnp.tanh(B @ params['e1_w'] + params['e1_b'][0])
        logits = jnp.tanh(h1 @ params['e2_w'] + params['e2_b'][0])  # (E, C, 1)
        return jax.nn.softmax(logits, axis=1)

    for _ in range(n_iters):
        e = edge_net(m)
        mi = jax.ops.segment_sum(e * m[row], col, num_segments=N)
        mo = jax.ops.segment_sum(e * m[col], row, num_segments=N)
        M = jnp.concatenate([mi, mo, m], axis=-1)
        h = jnp.tanh(M @ params['n1_w'] + params['n1_b'][0])
        H = jnp.tanh(h @ params['n2_w'] + params['n2_b'][0])
        m = jnp.concatenate([H, X], axis=-1)

    return edge_net(m)[..., 0]


# ---------------------------------- main --------------------------------------

if __name__ == "__main__":
    key = jax.random.PRNGKey(0)
    kx, ke, kp = jax.random.split(key, 3)

    N, E = 8, 16
    input_dim, hidden_dim, nclasses, n_iters = 2, 8, 4, 3

    x = jax.random.normal(kx, (N, input_dim), dtype=jnp.float32)
    edge_index = jax.random.randint(ke, (2, E), 0, N, dtype=jnp.int32)
    params = init_params(kp, input_dim, hidden_dim, nclasses)

    out = gnn_forward(params, x, edge_index, nclasses, hidden_dim, n_iters)
    out = jax.block_until_ready(out)

    ref = reference_forward(params, x, edge_index, nclasses, hidden_dim, n_iters)
    assert out.shape == (E, nclasses), out.shape
    max_err = float(jnp.max(jnp.abs(out - ref)))
    assert jnp.allclose(out, ref, atol=1e-4, rtol=1e-4), max_err

    print("KERNEL_OK")
</pallas_src>

<mosaic_0001>
module attributes {stable_mosaic.version = 11 : i64} {
  func.func @_gnn_kernel(%arg0: i32, %arg1: i32, %arg2: memref<16xi32, #tpu.memory_space<smem>>, %arg3: memref<16xi32, #tpu.memory_space<smem>>, %arg4: memref<8x2xf32, #tpu.memory_space<vmem>>, %arg5: memref<2x32xf32, #tpu.memory_space<vmem>>, %arg6: memref<1x32xf32, #tpu.memory_space<vmem>>, %arg7: memref<32x32xf32, #tpu.memory_space<vmem>>, %arg8: memref<2x32xf32, #tpu.memory_space<vmem>>, %arg9: memref<1x32xf32, #tpu.memory_space<vmem>>, %arg10: memref<32x32xf32, #tpu.memory_space<vmem>>, %arg11: memref<2x32xf32, #tpu.memory_space<vmem>>, %arg12: memref<32x4xf32, #tpu.memory_space<vmem>>, %arg13: memref<1x4xf32, #tpu.memory_space<vmem>>, %arg14: memref<4x32xf32, #tpu.memory_space<vmem>>, %arg15: memref<32x32xf32, #tpu.memory_space<vmem>>, %arg16: memref<2x32xf32, #tpu.memory_space<vmem>>, %arg17: memref<32x32xf32, #tpu.memory_space<vmem>>, %arg18: memref<2x32xf32, #tpu.memory_space<vmem>>, %arg19: memref<32x32xf32, #tpu.memory_space<vmem>>, %arg20: memref<2x32xf32, #tpu.memory_space<vmem>>, %arg21: memref<1x32xf32, #tpu.memory_space<vmem>>, %arg22: memref<32x32xf32, #tpu.memory_space<vmem>>, %arg23: memref<1x32xf32, #tpu.memory_space<vmem>>, %arg24: memref<16x4xf32, #tpu.memory_space<vmem>>, %arg25: memref<8x32xf32, #tpu.memory_space<vmem>>, %arg26: memref<8x32xf32, #tpu.memory_space<vmem>>, %arg27: memref<8x32xf32, #tpu.memory_space<vmem>>, %arg28: memref<8x32xf32, #tpu.memory_space<vmem>>, %arg29: memref<8x32xf32, #tpu.memory_space<vmem>>, %arg30: memref<8x32xf32, #tpu.memory_space<vmem>>, %arg31: memref<8x32xf32, #tpu.memory_space<vmem>>, %arg32: memref<16x32xf32, #tpu.memory_space<vmem>>) attributes {dimension_semantics = [#tpu.dimension_semantics<arbitrary>, #tpu.dimension_semantics<arbitrary>], iteration_bounds = array<i64: 4, 2>, scalar_prefetch = 2 : i64, scratch_operands = 8 : i64, tpu.core_type = #tpu.core_type<tc>, window_params = [{pipeline_mode = #tpu.pipeline_mode<synchronous>, transform_indices = @transform_0, window_bounds = array<i64: 8, 2>}, {pipeline_mode = #tpu.pipeline_mode<synchronous>, transform_indices = @transform_1, window_bounds = array<i64: 2, 32>}, {pipeline_mode = #tpu.pipeline_mode<synchronous>, transform_indices = @transform_2, window_bounds = array<i64: 1, 32>}, {pipeline_mode = #tpu.pipeline_mode<synchronous>, transform_indices = @transform_3, window_bounds = array<i64: 32, 32>}, {pipeline_mode = #tpu.pipeline_mode<synchronous>, transform_indices = @transform_4, window_bounds = array<i64: 2, 32>}, {pipeline_mode = #tpu.pipeline_mode<synchronous>, transform_indices = @transform_5, window_bounds = array<i64: 1, 32>}, {pipeline_mode = #tpu.pipeline_mode<synchronous>, transform_indices = @transform_6, window_bounds = array<i64: 32, 32>}, {pipeline_mode = #tpu.pipeline_mode<synchronous>, transform_indices = @transform_7, window_bounds = array<i64: 2, 32>}, {pipeline_mode = #tpu.pipeline_mode<synchronous>, transform_indices = @transform_8, window_bounds = array<i64: 32, 4>}, {pipeline_mode = #tpu.pipeline_mode<synchronous>, transform_indices = @transform_9, window_bounds = array<i64: 1, 4>}, {pipeline_mode = #tpu.pipeline_mode<synchronous>, transform_indices = @transform_10, window_bounds = array<i64: 4, 32>}, {pipeline_mode = #tpu.pipeline_mode<synchronous>, transform_indices = @transform_11, window_bounds = array<i64: 32, 32>}, {pipeline_mode = #tpu.pipeline_mode<synchronous>, transform_indices = @transform_12, window_bounds = array<i64: 2, 32>}, {pipeline_mode = #tpu.pipeline_mode<synchronous>, transform_indices = @transform_13, window_bounds = array<i64: 32, 32>}, {pipeline_mode = #tpu.pipeline_mode<synchronous>, transform_indices = @transform_14, window_bounds = array<i64: 2, 32>}, {pipeline_mode = #tpu.pipeline_mode<synchronous>, transform_indices = @transform_15, window_bounds = array<i64: 32, 32>}, {pipeline_mode = #tpu.pipeline_mode<synchronous>, transform_indices = @transform_16, window_bounds = array<i64: 2, 32>}, {pipeline_mode = #tpu.pipeline_mode<synchronous>, transform_indices = @transform_17, window_bounds = array<i64: 1, 32>}, {pipeline_mode = #tpu.pipeline_mode<synchronous>, transform_indices = @transform_18, window_bounds = array<i64: 32, 32>}, {pipeline_mode = #tpu.pipeline_mode<synchronous>, transform_indices = @transform_19, window_bounds = array<i64: 1, 32>}, {transform_indices = @transform_20, window_bounds = array<i64: 16, 4>}]} {
    %c0_i32 = arith.constant 0 : i32
    %0 = arith.cmpi eq, %arg0, %c0_i32 : i32
    %c0_i32_0 = arith.constant 0 : i32
    %1 = arith.cmpi eq, %arg1, %c0_i32_0 : i32
    %2 = arith.andi %0, %1 : i1
    %3 = arith.extui %2 : i1 to i32
    %c0_i32_1 = arith.constant 0 : i32
    %4 = arith.cmpi ne, %3, %c0_i32_1 : i32
    scf.if %4 {
      %c0 = arith.constant 0 : index
      %c0_5 = arith.constant 0 : index
      %13 = vector.load %arg4[%c0, %c0_5] : memref<8x2xf32, #tpu.memory_space<vmem>>, vector<8x2xf32>
      %c0_6 = arith.constant 0 : index
      %c0_7 = arith.constant 0 : index
      %14 = vector.load %arg5[%c0_6, %c0_7] : memref<2x32xf32, #tpu.memory_space<vmem>>, vector<2x32xf32>
      %cst = arith.constant dense<0.000000e+00> : vector<8x32xf32>
      %15 = tpu.matmul %13, %14, %cst {dimension_numbers = #tpu.dot_dimension_numbers<[1], [0], [0], [1], [0, 0, 1, 1], [], []>} : vector<8x2xf32>, vector<2x32xf32>, vector<8x32xf32> -> vector<8x32xf32>
      %c0_8 = arith.constant 0 : index
      %c0_9 = arith.constant 0 : index
      %16 = vector.load %arg6[%c0_8, %c0_9] : memref<1x32xf32, #tpu.memory_space<vmem>>, vector<1x32xf32>
      %17 = vector.broadcast %16 : vector<1x32xf32> to vector<8x32xf32>
      %18 = arith.addf %15, %17 : vector<8x32xf32>
      %19 = math.tanh %18 : vector<8x32xf32>
      %c0_10 = arith.constant 0 : index
      %c0_11 = arith.constant 0 : index
      %20 = vector.load %arg4[%c0_10, %c0_11] : memref<8x2xf32, #tpu.memory_space<vmem>>, vector<8x2xf32>
      %c0_12 = arith.constant 0 : index
      %c0_13 = arith.constant 0 : index
      %21 = vector.load %arg7[%c0_12, %c0_13] : memref<32x32xf32, #tpu.memory_space<vmem>>, vector<32x32xf32>
      %cst_14 = arith.constant dense<0.000000e+00> : vector<8x32xf32>
      %22 = tpu.matmul %19, %21, %cst_14 {dimension_numbers = #tpu.dot_dimension_numbers<[1], [0], [0], [1], [0, 0, 1, 1], [], []>} : vector<8x32xf32>, vector<32x32xf32>, vector<8x32xf32> -> vector<8x32xf32>
      %c0_15 = arith.constant 0 : index
      %c0_16 = arith.constant 0 : index
      %23 = vector.load %arg8[%c0_15, %c0_16] : memref<2x32xf32, #tpu.memory_space<vmem>>, vector<2x32xf32>
      %cst_17 = arith.constant dense<0.000000e+00> : vector<8x32xf32>
      %24 = tpu.matmul %20, %23, %cst_17 {dimension_numbers = #tpu.dot_dimension_numbers<[1], [0], [0], [1], [0, 0, 1, 1], [], []>} : vector<8x2xf32>, vector<2x32xf32>, vector<8x32xf32> -> vector<8x32xf32>
      %25 = arith.addf %22, %24 : vector<8x32xf32>
      %c0_18 = arith.constant 0 : index
      %c0_19 = arith.constant 0 : index
      %26 = vector.load %arg9[%c0_18, %c0_19] : memref<1x32xf32, #tpu.memory_space<vmem>>, vector<1x32xf32>
      %27 = vector.broadcast %26 : vector<1x32xf32> to vector<8x32xf32>
      %28 = arith.addf %25, %27 : vector<8x32xf32>
      %c0_20 = arith.constant 0 : index
      %c0_21 = arith.constant 0 : index
      %29 = vector.load %arg25[%c0_20, %c0_21] : memref<8x32xf32, #tpu.memory_space<vmem>>, vector<8x32xf32>
      tpu.vector_store %arg25[%c0_20, %c0_21], %28 {strides = array<i32>} : memref<8x32xf32, #tpu.memory_space<vmem>>, vector<8x32xf32>,
      %c0_22 = arith.constant 0 : index
      %c0_23 = arith.constant 0 : index
      %30 = vector.load %arg10[%c0_22, %c0_23] : memref<32x32xf32, #tpu.memory_space<vmem>>, vector<32x32xf32>
      %cst_24 = arith.constant dense<0.000000e+00> : vector<8x32xf32>
      %31 = tpu.matmul %19, %30, %cst_24 {dimension_numbers = #tpu.dot_dimension_numbers<[1], [0], [0], [1], [0, 0, 1, 1], [], []>} : vector<8x32xf32>, vector<32x32xf32>, vector<8x32xf32> -> vector<8x32xf32>
      %c0_25 = arith.constant 0 : index
      %c0_26 = arith.constant 0 : index
      %32 = vector.load %arg11[%c0_25, %c0_26] : memref<2x32xf32, #tpu.memory_space<vmem>>, vector<2x32xf32>
      %cst_27 = arith.constant dense<0.000000e+00> : vector<8x32xf32>
      %33 = tpu.matmul %20, %32, %cst_27 {dimension_numbers = #tpu.dot_dimension_numbers<[1], [0], [0], [1], [0, 0, 1, 1], [], []>} : vector<8x2xf32>, vector<2x32xf32>, vector<8x32xf32> -> vector<8x32xf32>
      %34 = arith.addf %31, %33 : vector<8x32xf32>
      %c0_28 = arith.constant 0 : index
      %c0_29 = arith.constant 0 : index
      %35 = vector.load %arg26[%c0_28, %c0_29] : memref<8x32xf32, #tpu.memory_space<vmem>>, vector<8x32xf32>
      tpu.vector_store %arg26[%c0_28, %c0_29], %34 {strides = array<i32>} : memref<8x32xf32, #tpu.memory_space<vmem>>, vector<8x32xf32>,
      %c0_30 = arith.constant 0 : index
      %c0_31 = arith.constant 0 : index
      %36 = vector.load %arg4[%c0_30, %c0_31] : memref<8x2xf32, #tpu.memory_space<vmem>>, vector<8x2xf32>
      %c0_32 = arith.constant 0 : index
      %c0_33 = arith.constant 0 : index
      %37 = vector.load %arg15[%c0_32, %c0_33] : memref<32x32xf32, #tpu.memory_space<vmem>>, vector<32x32xf32>
      %cst_34 = arith.constant dense<0.000000e+00> : vector<8x32xf32>
      %38 = tpu.matmul %19, %37, %cst_34 {dimension_numbers = #tpu.dot_dimension_numbers<[1], [0], [0], [1], [0, 0, 1, 1], [], []>} : vector<8x32xf32>, vector<32x32xf32>, vector<8x32xf32> -> vector<8x32xf32>
      %c0_35 = arith.constant 0 : index
      %c0_36 = arith.constant 0 : index
      %39 = vector.load %arg16[%c0_35, %c0_36] : memref<2x32xf32, #tpu.memory_space<vmem>>, vector<2x32xf32>
      %cst_37 = arith.constant dense<0.000000e+00> : vector<8x32xf32>
      %40 = tpu.matmul %36, %39, %cst_37 {dimension_numbers = #tpu.dot_dimension_numbers<[1], [0], [0], [1], [0, 0, 1, 1], [], []>} : vector<8x2xf32>, vector<2x32xf32>, vector<8x32xf32> -> vector<8x32xf32>
      %41 = arith.addf %38, %40 : vector<8x32xf32>
      %c0_38 = arith.constant 0 : index
      %c0_39 = arith.constant 0 : index
      %42 = vector.load %arg27[%c0_38, %c0_39] : memref<8x32xf32, #tpu.memory_space<vmem>>, vector<8x32xf32>
      tpu.vector_store %arg27[%c0_38, %c0_39], %41 {strides = array<i32>} : memref<8x32xf32, #tpu.memory_space<vmem>>, vector<8x32xf32>,
      %c0_40 = arith.constant 0 : index
      %c0_41 = arith.constant 0 : index
      %43 = vector.load %arg17[%c0_40, %c0_41] : memref<32x32xf32, #tpu.memory_space<vmem>>, vector<32x32xf32>
      %cst_42 = arith.constant dense<0.000000e+00> : vector<8x32xf32>
      %44 = tpu.matmul %19, %43, %cst_42 {dimension_numbers = #tpu.dot_dimension_numbers<[1], [0], [0], [1], [0, 0, 1, 1], [], []>} : vector<8x32xf32>, vector<32x32xf32>, vector<8x32xf32> -> vector<8x32xf32>
      %c0_43 = arith.constant 0 : index
      %c0_44 = arith.constant 0 : index
      %45 = vector.load %arg18[%c0_43, %c0_44] : memref<2x32xf32, #tpu.memory_space<vmem>>, vector<2x32xf32>
      %cst_45 = arith.constant dense<0.000000e+00> : vector<8x32xf32>
      %46 = tpu.matmul %36, %45, %cst_45 {dimension_numbers = #tpu.dot_dimension_numbers<[1], [0], [0], [1], [0, 0, 1, 1], [], []>} : vector<8x2xf32>, vector<2x32xf32>, vector<8x32xf32> -> vector<8x32xf32>
      %47 = arith.addf %44, %46 : vector<8x32xf32>
      %c0_46 = arith.constant 0 : index
      %c0_47 = arith.constant 0 : index
      %48 = vector.load %arg28[%c0_46, %c0_47] : memref<8x32xf32, #tpu.memory_space<vmem>>, vector<8x32xf32>
      tpu.vector_store %arg28[%c0_46, %c0_47], %47 {strides = array<i32>} : memref<8x32xf32, #tpu.memory_space<vmem>>, vector<8x32xf32>,
      %c0_48 = arith.constant 0 : index
      %c0_49 = arith.constant 0 : index
      %49 = vector.load %arg19[%c0_48, %c0_49] : memref<32x32xf32, #tpu.memory_space<vmem>>, vector<32x32xf32>
      %cst_50 = arith.constant dense<0.000000e+00> : vector<8x32xf32>
      %50 = tpu.matmul %19, %49, %cst_50 {dimension_numbers = #tpu.dot_dimension_numbers<[1], [0], [0], [1], [0, 0, 1, 1], [], []>} : vector<8x32xf32>, vector<32x32xf32>, vector<8x32xf32> -> vector<8x32xf32>
      %c0_51 = arith.constant 0 : index
      %c0_52 = arith.constant 0 : index
      %51 = vector.load %arg20[%c0_51, %c0_52] : memref<2x32xf32, #tpu.memory_space<vmem>>, vector<2x32xf32>
      %cst_53 = arith.constant dense<0.000000e+00> : vector<8x32xf32>
      %52 = tpu.matmul %36, %51, %cst_53 {dimension_numbers = #tpu.dot_dimension_numbers<[1], [0], [0], [1], [0, 0, 1, 1], [], []>} : vector<8x2xf32>, vector<2x32xf32>, vector<8x32xf32> -> vector<8x32xf32>
      %53 = arith.addf %50, %52 : vector<8x32xf32>
      %c0_54 = arith.constant 0 : index
      %c0_55 = arith.constant 0 : index
      %54 = vector.load %arg21[%c0_54, %c0_55] : memref<1x32xf32, #tpu.memory_space<vmem>>, vector<1x32xf32>
      %55 = vector.broadcast %54 : vector<1x32xf32> to vector<8x32xf32>
      %56 = arith.addf %53, %55 : vector<8x32xf32>
      %c0_56 = arith.constant 0 : index
      %c0_57 = arith.constant 0 : index
      %57 = vector.load %arg29[%c0_56, %c0_57] : memref<8x32xf32, #tpu.memory_space<vmem>>, vector<8x32xf32>
      tpu.vector_store %arg29[%c0_56, %c0_57], %56 {strides = array<i32>} : memref<8x32xf32, #tpu.memory_space<vmem>>, vector<8x32xf32>,
      %cst_58 = arith.constant 0.000000e+00 : f32
      %58 = vector.broadcast %cst_58 : f32 to vector<8x32xf32>
      %c0_59 = arith.constant 0 : index
      %c0_60 = arith.constant 0 : index
      %59 = vector.load %arg30[%c0_59, %c0_60] : memref<8x32xf32, #tpu.memory_space<vmem>>, vector<8x32xf32>
      tpu.vector_store %arg30[%c0_59, %c0_60], %58 {strides = array<i32>} : memref<8x32xf32, #tpu.memory_space<vmem>>, vector<8x32xf32>,
      %cst_61 = arith.constant 0.000000e+00 : f32
      %60 = vector.broadcast %cst_61 : f32 to vector<8x32xf32>
      %c0_62 = arith.constant 0 : index
      %c0_63 = arith.constant 0 : index
      %61 = vector.load %arg31[%c0_62, %c0_63] : memref<8x32xf32, #tpu.memory_space<vmem>>, vector<8x32xf32>
      tpu.vector_store %arg31[%c0_62, %c0_63], %60 {strides = array<i32>} : memref<8x32xf32, #tpu.memory_space<vmem>>, vector<8x32xf32>,
    } else {
    }
    %c1_i32 = arith.constant 1 : i32
    %5 = arith.cmpi slt, %arg1, %c1_i32 : i32
    %6 = arith.extui %5 : i1 to i32
    %c0_i32_2 = arith.constant 0 : i32
    %7 = arith.cmpi ne, %6, %c0_i32_2 : i32
    scf.if %7 {
      %c16_i32 = arith.constant 16 : i32
      %13 = arith.muli %arg1, %c16_i32 : i32
      %c0_i32_5 = arith.constant 0 : i32
      %c16_i32_6 = arith.constant 16 : i32
      %14 = arith.addi %c0_i32_5, %c16_i32_6 : i32
      %c1_i32_7 = arith.constant 1 : i32
      scf.for %arg33 = %c0_i32_5 to %14 step %c1_i32_7  : i32 {
        %c1_i32_25 = arith.constant 1 : i32
        %40 = arith.muli %arg33, %c1_i32_25 : i32
        %c0_i32_26 = arith.constant 0 : i32
        %41 = arith.addi %c0_i32_26, %40 : i32
        %42 = arith.addi %13, %41 : i32
        %43 = arith.index_cast %42 : i32 to index
        %44 = memref.load %arg2[%43] : memref<16xi32, #tpu.memory_space<smem>>
        %45 = arith.index_cast %42 : i32 to index
        %46 = memref.load %arg3[%45] : memref<16xi32, #tpu.memory_space<smem>>
        %47 = arith.index_cast %46 : i32 to index
        %c0_27 = arith.constant 0 : index
        %48 = vector.load %arg25[%47, %c0_27] : memref<8x32xf32, #tpu.memory_space<vmem>>, vector<1x32xf32>
        %49 = arith.index_cast %44 : i32 to index
        %c0_28 = arith.constant 0 : index
        %50 = vector.load %arg26[%49, %c0_28] : memref<8x32xf32, #tpu.memory_space<vmem>>, vector<1x32xf32>
        %51 = arith.addf %48, %50 : vector<1x32xf32>
        %52 = arith.index_cast %41 : i32 to index
        %c0_29 = arith.constant 0 : index
        %53 = vector.load %arg32[%52, %c0_29] : memref<16x32xf32, #tpu.memory_space<vmem>>, vector<1x32xf32>
        tpu.vector_store %arg32[%52, %c0_29], %51 {strides = array<i32>} : memref<16x32xf32, #tpu.memory_space<vmem>>, vector<1x32xf32>,
      }
      %c16_i32_8 = arith.constant 16 : i32
      %c0 = arith.constant 0 : index
      %c0_9 = arith.constant 0 : index
      %15 = vector.load %arg32[%c0, %c0_9] : memref<16x32xf32, #tpu.memory_space<vmem>>, vector<16x32xf32>
      %16 = math.tanh %15 : vector<16x32xf32>
      %c0_10 = arith.constant 0 : index
      %c0_11 = arith.constant 0 : index
      %17 = vector.load %arg12[%c0_10, %c0_11] : memref<32x4xf32, #tpu.memory_space<vmem>>, vector<32x4xf32>
      %cst = arith.constant dense<0.000000e+00> : vector<16x4xf32>
      %18 = tpu.matmul %16, %17, %cst {dimension_numbers = #tpu.dot_dimension_numbers<[1], [0], [0], [1], [0, 0, 1, 1], [], []>} : vector<16x32xf32>, vector<32x4xf32>, vector<16x4xf32> -> vector<16x4xf32>
      %c0_12 = arith.constant 0 : index
      %c0_13 = arith.constant 0 : index
      %19 = vector.load %arg13[%c0_12, %c0_13] : memref<1x4xf32, #tpu.memory_space<vmem>>, vector<1x4xf32>
      %20 = vector.broadcast %19 : vector<1x4xf32> to vector<16x4xf32>
      %21 = arith.addf %18, %20 : vector<16x4xf32>
      %22 = math.tanh %21 : vector<16x4xf32>
      %cst_14 = arith.constant dense<0xFF800000> : vector<16xf32>
      %23 = vector.multi_reduction <maximumf>, %22, %cst_14 [1] : vector<16x4xf32> to vector<16xf32>
      %24 = vector.shape_cast %23 : vector<16xf32> to vector<16x1xf32>
      %25 = vector.broadcast %24 : vector<16x1xf32> to vector<16x4xf32>
      %26 = arith.subf %22, %25 : vector<16x4xf32>
      %27 = math.exp %26 : vector<16x4xf32>
      %cst_15 = arith.constant dense<0.000000e+00> : vector<16xf32>
      %28 = vector.multi_reduction <add>, %27, %cst_15 [1] : vector<16x4xf32> to vector<16xf32>
      %29 = vector.shape_cast %28 : vector<16xf32> to vector<16x1xf32>
      %30 = tpu.reciprocal %29 : vector<16x1xf32> -> vector<16x1xf32>
      %31 = vector.broadcast %30 : vector<16x1xf32> to vector<16x4xf32>
      %32 = arith.mulf %27, %31 : vector<16x4xf32>
      %c0_16 = arith.constant 0 : index
      %c0_17 = arith.constant 0 : index
      %33 = vector.load %arg24[%c0_16, %c0_17] : memref<16x4xf32, #tpu.memory_space<vmem>>, vector<16x4xf32>
      tpu.vector_store %arg24[%c0_16, %c0_17], %32 {strides = array<i32>} : memref<16x4xf32, #tpu.memory_space<vmem>>, vector<16x4xf32>,
      %c0_18 = arith.constant 0 : index
      %c0_19 = arith.constant 0 : index
      %34 = vector.load %arg14[%c0_18, %c0_19] : memref<4x32xf32, #tpu.memory_space<vmem>>, vector<4x32xf32>
      %cst_20 = arith.constant dense<0.000000e+00> : vector<16x32xf32>
      %35 = tpu.matmul %32, %34, %cst_20 {dimension_numbers = #tpu.dot_dimension_numbers<[1], [0], [0], [1], [0, 0, 1, 1], [], []>} : vector<16x4xf32>, vector<4x32xf32>, vector<16x32xf32> -> vector<16x32xf32>
      %c0_21 = arith.constant 0 : index
      %c0_22 = arith.constant 0 : index
      %36 = vector.load %arg32[%c0_21, %c0_22] : memref<16x32xf32, #tpu.memory_space<vmem>>, vector<16x32xf32>
      tpu.vector_store %arg32[%c0_21, %c0_22], %35 {strides = array<i32>} : memref<16x32xf32, #tpu.memory_space<vmem>>, vector<16x32xf32>,
      %c3_i32_23 = arith.constant 3 : i32
      %37 = arith.cmpi slt, %arg0, %c3_i32_23 : i32
      %38 = arith.extui %37 : i1 to i32
      %c0_i32_24 = arith.constant 0 : i32
      %39 = arith.cmpi ne, %38, %c0_i32_24 : i32
      scf.if %39 {
        %c0_i32_25 = arith.constant 0 : i32
        %c16_i32_26 = arith.constant 16 : i32
        %40 = arith.addi %c0_i32_25, %c16_i32_26 : i32
        %c1_i32_27 = arith.constant 1 : i32
        scf.for %arg33 = %c0_i32_25 to %40 step %c1_i32_27  : i32 {
          %c1_i32_29 = arith.constant 1 : i32
          %41 = arith.muli %arg33, %c1_i32_29 : i32
          %c0_i32_30 = arith.constant 0 : i32
          %42 = arith.addi %c0_i32_30, %41 : i32
          %43 = arith.addi %13, %42 : i32
          %c16_i32_31 = arith.constant 16 : i32
          %44 = arith.cmpi slt, %43, %c16_i32_31 : i32
          %45 = arith.extui %44 : i1 to i32
          %c0_i32_32 = arith.constant 0 : i32
          %46 = arith.cmpi ne, %45, %c0_i32_32 : i32
          scf.if %46 {
            %47 = arith.index_cast %43 : i32 to index
            %48 = memref.load %arg2[%47] : memref<16xi32, #tpu.memory_space<smem>>
            %49 = arith.index_cast %43 : i32 to index
            %50 = memref.load %arg3[%49] : memref<16xi32, #tpu.memory_space<smem>>
            %51 = arith.index_cast %42 : i32 to index
            %c0_33 = arith.constant 0 : index
            %52 = vector.load %arg32[%51, %c0_33] : memref<16x32xf32, #tpu.memory_space<vmem>>, vector<1x32xf32>
            %53 = arith.index_cast %50 : i32 to index
            %c0_34 = arith.constant 0 : index
            %54 = vector.load %arg30[%53, %c0_34] : memref<8x32xf32, #tpu.memory_space<vmem>>, vector<1x32xf32>
            %55 = arith.index_cast %48 : i32 to index
            %c0_35 = arith.constant 0 : index
            %56 = vector.load %arg27[%55, %c0_35] : memref<8x32xf32, #tpu.memory_space<vmem>>, vector<1x32xf32>
            %57 = arith.mulf %52, %56 : vector<1x32xf32>
            %58 = arith.addf %54, %57 : vector<1x32xf32>
            %59 = arith.index_cast %50 : i32 to index
            %c0_36 = arith.constant 0 : index
            %60 = vector.load %arg30[%59, %c0_36] : memref<8x32xf32, #tpu.memory_space<vmem>>, vector<1x32xf32>
            tpu.vector_store %arg30[%59, %c0_36], %58 {strides = array<i32>} : memref<8x32xf32, #tpu.memory_space<vmem>>, vector<1x32xf32>,
            %61 = arith.index_cast %48 : i32 to index
            %c0_37 = arith.constant 0 : index
            %62 = vector.load %arg31[%61, %c0_37] : memref<8x32xf32, #tpu.memory_space<vmem>>, vector<1x32xf32>
            %63 = arith.index_cast %50 : i32 to index
            %c0_38 = arith.constant 0 : index
            %64 = vector.load %arg28[%63, %c0_38] : memref<8x32xf32, #tpu.memory_space<vmem>>, vector<1x32xf32>
            %65 = arith.mulf %52, %64 : vector<1x32xf32>
            %66 = arith.addf %62, %65 : vector<1x32xf32>
            %67 = arith.index_cast %48 : i32 to index
            %c0_39 = arith.constant 0 : index
            %68 = vector.load %arg31[%67, %c0_39] : memref<8x32xf32, #tpu.memory_space<vmem>>, vector<1x32xf32>
            tpu.vector_store %arg31[%67, %c0_39], %66 {strides = array<i32>} : memref<8x32xf32, #tpu.memory_space<vmem>>, vector<1x32xf32>,
          } else {
          }
        }
        %c16_i32_28 = arith.constant 16 : i32
      } else {
      }
    } else {
    }
    %c1_i32_3 = arith.constant 1 : i32
    %8 = arith.cmpi eq, %arg1, %c1_i32_3 : i32
    %c3_i32 = arith.constant 3 : i32
    %9 = arith.cmpi slt, %arg0, %c3_i32 : i32
    %10 = arith.andi %8, %9 : i1
    %11 = arith.extui %10 : i1 to i32
    %c0_i32_4 = arith.constant 0 : i32
    %12 = arith.cmpi ne, %11, %c0_i32_4 : i32
    scf.if %12 {
      %c0 = arith.constant 0 : index
      %c0_5 = arith.constant 0 : index
      %13 = vector.load %arg30[%c0, %c0_5] : memref<8x32xf32, #tpu.memory_space<vmem>>, vector<8x32xf32>
      %c0_6 = arith.constant 0 : index
      %c0_7 = arith.constant 0 : index
      %14 = vector.load %arg31[%c0_6, %c0_7] : memref<8x32xf32, #tpu.memory_space<vmem>>, vector<8x32xf32>
      %15 = arith.addf %13, %14 : vector<8x32xf32>
      %c0_8 = arith.constant 0 : index
      %c0_9 = arith.constant 0 : index
      %16 = vector.load %arg29[%c0_8, %c0_9] : memref<8x32xf32, #tpu.memory_space<vmem>>, vector<8x32xf32>
      %17 = arith.addf %15, %16 : vector<8x32xf32>
      %18 = math.tanh %17 : vector<8x32xf32>
      %c0_10 = arith.constant 0 : index
      %c0_11 = arith.constant 0 : index
      %19 = vector.load %arg22[%c0_10, %c0_11] : memref<32x32xf32, #tpu.memory_space<vmem>>, vector<32x32xf32>
      %cst = arith.constant dense<0.000000e+00> : vector<8x32xf32>
      %20 = tpu.matmul %18, %19, %cst {dimension_numbers = #tpu.dot_dimension_numbers<[1], [0], [0], [1], [0, 0, 1, 1], [], []>} : vector<8x32xf32>, vector<32x32xf32>, vector<8x32xf32> -> vector<8x32xf32>
      %c0_12 = arith.constant 0 : index
      %c0_13 = arith.constant 0 : index
      %21 = vector.load %arg23[%c0_12, %c0_13] : memref<1x32xf32, #tpu.memory_space<vmem>>, vector<1x32xf32>
      %22 = vector.broadcast %21 : vector<1x32xf32> to vector<8x32xf32>
      %23 = arith.addf %20, %22 : vector<8x32xf32>
      %24 = math.tanh %23 : vector<8x32xf32>
      %c0_14 = arith.constant 0 : index
      %c0_15 = arith.constant 0 : index
      %25 = vector.load %arg4[%c0_14, %c0_15] : memref<8x2xf32, #tpu.memory_space<vmem>>, vector<8x2xf32>
      %c0_16 = arith.constant 0 : index
      %c0_17 = arith.constant 0 : index
      %26 = vector.load %arg7[%c0_16, %c0_17] : memref<32x32xf32, #tpu.memory_space<vmem>>, vector<32x32xf32>
      %cst_18 = arith.constant dense<0.000000e+00> : vector<8x32xf32>
      %27 = tpu.matmul %24, %26, %cst_18 {dimension_numbers = #tpu.dot_dimension_numbers<[1], [0], [0], [1], [0, 0, 1, 1], [], []>} : vector<8x32xf32>, vector<32x32xf32>, vector<8x32xf32> -> vector<8x32xf32>
      %c0_19 = arith.constant 0 : index
      %c0_20 = arith.constant 0 : index
      %28 = vector.load %arg8[%c0_19, %c0_20] : memref<2x32xf32, #tpu.memory_space<vmem>>, vector<2x32xf32>
      %cst_21 = arith.constant dense<0.000000e+00> : vector<8x32xf32>
      %29 = tpu.matmul %25, %28, %cst_21 {dimension_numbers = #tpu.dot_dimension_numbers<[1], [0], [0], [1], [0, 0, 1, 1], [], []>} : vector<8x2xf32>, vector<2x32xf32>, vector<8x32xf32> -> vector<8x32xf32>
      %30 = arith.addf %27, %29 : vector<8x32xf32>
      %c0_22 = arith.constant 0 : index
      %c0_23 = arith.constant 0 : index
      %31 = vector.load %arg9[%c0_22, %c0_23] : memref<1x32xf32, #tpu.memory_space<vmem>>, vector<1x32xf32>
      %32 = vector.broadcast %31 : vector<1x32xf32> to vector<8x32xf32>
      %33 = arith.addf %30, %32 : vector<8x32xf32>
      %c0_24 = arith.constant 0 : index
      %c0_25 = arith.constant 0 : index
      %34 = vector.load %arg25[%c0_24, %c0_25] : memref<8x32xf32, #tpu.memory_space<vmem>>, vector<8x32xf32>
      tpu.vector_store %arg25[%c0_24, %c0_25], %33 {strides = array<i32>} : memref<8x32xf32, #tpu.memory_space<vmem>>, vector<8x32xf32>,
      %c0_26 = arith.constant 0 : index
      %c0_27 = arith.constant 0 : index
      %35 = vector.load %arg10[%c0_26, %c0_27] : memref<32x32xf32, #tpu.memory_space<vmem>>, vector<32x32xf32>
      %cst_28 = arith.constant dense<0.000000e+00> : vector<8x32xf32>
      %36 = tpu.matmul %24, %35, %cst_28 {dimension_numbers = #tpu.dot_dimension_numbers<[1], [0], [0], [1], [0, 0, 1, 1], [], []>} : vector<8x32xf32>, vector<32x32xf32>, vector<8x32xf32> -> vector<8x32xf32>
      %c0_29 = arith.constant 0 : index
      %c0_30 = arith.constant 0 : index
      %37 = vector.load %arg11[%c0_29, %c0_30] : memref<2x32xf32, #tpu.memory_space<vmem>>, vector<2x32xf32>
      %cst_31 = arith.constant dense<0.000000e+00> : vector<8x32xf32>
      %38 = tpu.matmul %25, %37, %cst_31 {dimension_numbers = #tpu.dot_dimension_numbers<[1], [0], [0], [1], [0, 0, 1, 1], [], []>} : vector<8x2xf32>, vector<2x32xf32>, vector<8x32xf32> -> vector<8x32xf32>
      %39 = arith.addf %36, %38 : vector<8x32xf32>
      %c0_32 = arith.constant 0 : index
      %c0_33 = arith.constant 0 : index
      %40 = vector.load %arg26[%c0_32, %c0_33] : memref<8x32xf32, #tpu.memory_space<vmem>>, vector<8x32xf32>
      tpu.vector_store %arg26[%c0_32, %c0_33], %39 {strides = array<i32>} : memref<8x32xf32, #tpu.memory_space<vmem>>, vector<8x32xf32>,
      %c2_i32 = arith.constant 2 : i32
      %41 = arith.cmpi slt, %arg0, %c2_i32 : i32
      %42 = arith.extui %41 : i1 to i32
      %c0_i32_34 = arith.constant 0 : i32
      %43 = arith.cmpi ne, %42, %c0_i32_34 : i32
      scf.if %43 {
        %c0_35 = arith.constant 0 : index
        %c0_36 = arith.constant 0 : index
        %44 = vector.load %arg4[%c0_35, %c0_36] : memref<8x2xf32, #tpu.memory_space<vmem>>, vector<8x2xf32>
        %c0_37 = arith.constant 0 : index
        %c0_38 = arith.constant 0 : index
        %45 = vector.load %arg15[%c0_37, %c0_38] : memref<32x32xf32, #tpu.memory_space<vmem>>, vector<32x32xf32>
        %cst_39 = arith.constant dense<0.000000e+00> : vector<8x32xf32>
        %46 = tpu.matmul %24, %45, %cst_39 {dimension_numbers = #tpu.dot_dimension_numbers<[1], [0], [0], [1], [0, 0, 1, 1], [], []>} : vector<8x32xf32>, vector<32x32xf32>, vector<8x32xf32> -> vector<8x32xf32>
        %c0_40 = arith.constant 0 : index
        %c0_41 = arith.constant 0 : index
        %47 = vector.load %arg16[%c0_40, %c0_41] : memref<2x32xf32, #tpu.memory_space<vmem>>, vector<2x32xf32>
        %cst_42 = arith.constant dense<0.000000e+00> : vector<8x32xf32>
        %48 = tpu.matmul %44, %47, %cst_42 {dimension_numbers = #tpu.dot_dimension_numbers<[1], [0], [0], [1], [0, 0, 1, 1], [], []>} : vector<8x2xf32>, vector<2x32xf32>, vector<8x32xf32> -> vector<8x32xf32>
        %49 = arith.addf %46, %48 : vector<8x32xf32>
        %c0_43 = arith.constant 0 : index
        %c0_44 = arith.constant 0 : index
        %50 = vector.load %arg27[%c0_43, %c0_44] : memref<8x32xf32, #tpu.memory_space<vmem>>, vector<8x32xf32>
        tpu.vector_store %arg27[%c0_43, %c0_44], %49 {strides = array<i32>} : memref<8x32xf32, #tpu.memory_space<vmem>>, vector<8x32xf32>,
        %c0_45 = arith.constant 0 : index
        %c0_46 = arith.constant 0 : index
        %51 = vector.load %arg17[%c0_45, %c0_46] : memref<32x32xf32, #tpu.memory_space<vmem>>, vector<32x32xf32>
        %cst_47 = arith.constant dense<0.000000e+00> : vector<8x32xf32>
        %52 = tpu.matmul %24, %51, %cst_47 {dimension_numbers = #tpu.dot_dimension_numbers<[1], [0], [0], [1], [0, 0, 1, 1], [], []>} : vector<8x32xf32>, vector<32x32xf32>, vector<8x32xf32> -> vector<8x32xf32>
        %c0_48 = arith.constant 0 : index
        %c0_49 = arith.constant 0 : index
        %53 = vector.load %arg18[%c0_48, %c0_49] : memref<2x32xf32, #tpu.memory_space<vmem>>, vector<2x32xf32>
        %cst_50 = arith.constant dense<0.000000e+00> : vector<8x32xf32>
        %54 = tpu.matmul %44, %53, %cst_50 {dimension_numbers = #tpu.dot_dimension_numbers<[1], [0], [0], [1], [0, 0, 1, 1], [], []>} : vector<8x2xf32>, vector<2x32xf32>, vector<8x32xf32> -> vector<8x32xf32>
        %55 = arith.addf %52, %54 : vector<8x32xf32>
        %c0_51 = arith.constant 0 : index
        %c0_52 = arith.constant 0 : index
        %56 = vector.load %arg28[%c0_51, %c0_52] : memref<8x32xf32, #tpu.memory_space<vmem>>, vector<8x32xf32>
        tpu.vector_store %arg28[%c0_51, %c0_52], %55 {strides = array<i32>} : memref<8x32xf32, #tpu.memory_space<vmem>>, vector<8x32xf32>,
        %c0_53 = arith.constant 0 : index
        %c0_54 = arith.constant 0 : index
        %57 = vector.load %arg19[%c0_53, %c0_54] : memref<32x32xf32, #tpu.memory_space<vmem>>, vector<32x32xf32>
        %cst_55 = arith.constant dense<0.000000e+00> : vector<8x32xf32>
        %58 = tpu.matmul %24, %57, %cst_55 {dimension_numbers = #tpu.dot_dimension_numbers<[1], [0], [0], [1], [0, 0, 1, 1], [], []>} : vector<8x32xf32>, vector<32x32xf32>, vector<8x32xf32> -> vector<8x32xf32>
        %c0_56 = arith.constant 0 : index
        %c0_57 = arith.constant 0 : index
        %59 = vector.load %arg20[%c0_56, %c0_57] : memref<2x32xf32, #tpu.memory_space<vmem>>, vector<2x32xf32>
        %cst_58 = arith.constant dense<0.000000e+00> : vector<8x32xf32>
        %60 = tpu.matmul %44, %59, %cst_58 {dimension_numbers = #tpu.dot_dimension_numbers<[1], [0], [0], [1], [0, 0, 1, 1], [], []>} : vector<8x2xf32>, vector<2x32xf32>, vector<8x32xf32> -> vector<8x32xf32>
        %61 = arith.addf %58, %60 : vector<8x32xf32>
        %c0_59 = arith.constant 0 : index
        %c0_60 = arith.constant 0 : index
        %62 = vector.load %arg21[%c0_59, %c0_60] : memref<1x32xf32, #tpu.memory_space<vmem>>, vector<1x32xf32>
        %63 = vector.broadcast %62 : vector<1x32xf32> to vector<8x32xf32>
        %64 = arith.addf %61, %63 : vector<8x32xf32>
        %c0_61 = arith.constant 0 : index
        %c0_62 = arith.constant 0 : index
        %65 = vector.load %arg29[%c0_61, %c0_62] : memref<8x32xf32, #tpu.memory_space<vmem>>, vector<8x32xf32>
        tpu.vector_store %arg29[%c0_61, %c0_62], %64 {strides = array<i32>} : memref<8x32xf32, #tpu.memory_space<vmem>>, vector<8x32xf32>,
        %cst_63 = arith.constant 0.000000e+00 : f32
        %66 = vector.broadcast %cst_63 : f32 to vector<8x32xf32>
        %c0_64 = arith.constant 0 : index
        %c0_65 = arith.constant 0 : index
        %67 = vector.load %arg30[%c0_64, %c0_65] : memref<8x32xf32, #tpu.memory_space<vmem>>, vector<8x32xf32>
        tpu.vector_store %arg30[%c0_64, %c0_65], %66 {strides = array<i32>} : memref<8x32xf32, #tpu.memory_space<vmem>>, vector<8x32xf32>,
        %cst_66 = arith.constant 0.000000e+00 : f32
        %68 = vector.broadcast %cst_66 : f32 to vector<8x32xf32>
        %c0_67 = arith.constant 0 : index
        %c0_68 = arith.constant 0 : index
        %69 = vector.load %arg31[%c0_67, %c0_68] : memref<8x32xf32, #tpu.memory_space<vmem>>, vector<8x32xf32>
        tpu.vector_store %arg31[%c0_67, %c0_68], %68 {strides = array<i32>} : memref<8x32xf32, #tpu.memory_space<vmem>>, vector<8x32xf32>,
      } else {
      }
    } else {
    }
    return
  }
  func.func @transform_0(%arg0: i32, %arg1: i32, %arg2: memref<16xi32, #tpu.memory_space<smem>>, %arg3: memref<16xi32, #tpu.memory_space<smem>>) -> (i32, i32) {
    %c0_i32 = arith.constant 0 : i32
    %c0_i32_0 = arith.constant 0 : i32
    %c0_i32_1 = arith.constant 0 : i32
    return %c0_i32, %c0_i32_0 : i32, i32
  }
  func.func @transform_1(%arg0: i32, %arg1: i32, %arg2: memref<16xi32, #tpu.memory_space<smem>>, %arg3: memref<16xi32, #tpu.memory_space<smem>>) -> (i32, i32) {
    %c0_i32 = arith.constant 0 : i32
    %c0_i32_0 = arith.constant 0 : i32
    %c0_i32_1 = arith.constant 0 : i32
    return %c0_i32, %c0_i32_0 : i32, i32
  }
  func.func @transform_2(%arg0: i32, %arg1: i32, %arg2: memref<16xi32, #tpu.memory_space<smem>>, %arg3: memref<16xi32, #tpu.memory_space<smem>>) -> (i32, i32) {
    %c0_i32 = arith.constant 0 : i32
    %c0_i32_0 = arith.constant 0 : i32
    %c0_i32_1 = arith.constant 0 : i32
    return %c0_i32, %c0_i32_0 : i32, i32
  }
  func.func @transform_3(%arg0: i32, %arg1: i32, %arg2: memref<16xi32, #tpu.memory_space<smem>>, %arg3: memref<16xi32, #tpu.memory_space<smem>>) -> (i32, i32) {
    %c0_i32 = arith.constant 0 : i32
    %c0_i32_0 = arith.constant 0 : i32
    %c0_i32_1 = arith.constant 0 : i32
    return %c0_i32, %c0_i32_0 : i32, i32
  }
  func.func @transform_4(%arg0: i32, %arg1: i32, %arg2: memref<16xi32, #tpu.memory_space<smem>>, %arg3: memref<16xi32, #tpu.memory_space<smem>>) -> (i32, i32) {
    %c0_i32 = arith.constant 0 : i32
    %c0_i32_0 = arith.constant 0 : i32
    %c0_i32_1 = arith.constant 0 : i32
    return %c0_i32, %c0_i32_0 : i32, i32
  }
  func.func @transform_5(%arg0: i32, %arg1: i32, %arg2: memref<16xi32, #tpu.memory_space<smem>>, %arg3: memref<16xi32, #tpu.memory_space<smem>>) -> (i32, i32) {
    %c0_i32 = arith.constant 0 : i32
    %c0_i32_0 = arith.constant 0 : i32
    %c0_i32_1 = arith.constant 0 : i32
    return %c0_i32, %c0_i32_0 : i32, i32
  }
  func.func @transform_6(%arg0: i32, %arg1: i32, %arg2: memref<16xi32, #tpu.memory_space<smem>>, %arg3: memref<16xi32, #tpu.memory_space<smem>>) -> (i32, i32) {
    %c0_i32 = arith.constant 0 : i32
    %c0_i32_0 = arith.constant 0 : i32
    %c0_i32_1 = arith.constant 0 : i32
    return %c0_i32, %c0_i32_0 : i32, i32
  }
  func.func @transform_7(%arg0: i32, %arg1: i32, %arg2: memref<16xi32, #tpu.memory_space<smem>>, %arg3: memref<16xi32, #tpu.memory_space<smem>>) -> (i32, i32) {
    %c0_i32 = arith.constant 0 : i32
    %c0_i32_0 = arith.constant 0 : i32
    %c0_i32_1 = arith.constant 0 : i32
    return %c0_i32, %c0_i32_0 : i32, i32
  }
  func.func @transform_8(%arg0: i32, %arg1: i32, %arg2: memref<16xi32, #tpu.memory_space<smem>>, %arg3: memref<16xi32, #tpu.memory_space<smem>>) -> (i32, i32) {
    %c0_i32 = arith.constant 0 : i32
    %c0_i32_0 = arith.constant 0 : i32
    %c0_i32_1 = arith.constant 0 : i32
    return %c0_i32, %c0_i32_0 : i32, i32
  }
  func.func @transform_9(%arg0: i32, %arg1: i32, %arg2: memref<16xi32, #tpu.memory_space<smem>>, %arg3: memref<16xi32, #tpu.memory_space<smem>>) -> (i32, i32) {
    %c0_i32 = arith.constant 0 : i32
    %c0_i32_0 = arith.constant 0 : i32
    %c0_i32_1 = arith.constant 0 : i32
    return %c0_i32, %c0_i32_0 : i32, i32
  }
  func.func @transform_10(%arg0: i32, %arg1: i32, %arg2: memref<16xi32, #tpu.memory_space<smem>>, %arg3: memref<16xi32, #tpu.memory_space<smem>>) -> (i32, i32) {
    %c0_i32 = arith.constant 0 : i32
    %c0_i32_0 = arith.constant 0 : i32
    %c0_i32_1 = arith.constant 0 : i32
    return %c0_i32, %c0_i32_0 : i32, i32
  }
  func.func @transform_11(%arg0: i32, %arg1: i32, %arg2: memref<16xi32, #tpu.memory_space<smem>>, %arg3: memref<16xi32, #tpu.memory_space<smem>>) -> (i32, i32) {
    %c0_i32 = arith.constant 0 : i32
    %c0_i32_0 = arith.constant 0 : i32
    %c0_i32_1 = arith.constant 0 : i32
    return %c0_i32, %c0_i32_0 : i32, i32
  }
  func.func @transform_12(%arg0: i32, %arg1: i32, %arg2: memref<16xi32, #tpu.memory_space<smem>>, %arg3: memref<16xi32, #tpu.memory_space<smem>>) -> (i32, i32) {
    %c0_i32 = arith.constant 0 : i32
    %c0_i32_0 = arith.constant 0 : i32
    %c0_i32_1 = arith.constant 0 : i32
    return %c0_i32, %c0_i32_0 : i32, i32
  }
  func.func @transform_13(%arg0: i32, %arg1: i32, %arg2: memref<16xi32, #tpu.memory_space<smem>>, %arg3: memref<16xi32, #tpu.memory_space<smem>>) -> (i32, i32) {
    %c0_i32 = arith.constant 0 : i32
    %c0_i32_0 = arith.constant 0 : i32
    %c0_i32_1 = arith.constant 0 : i32
    return %c0_i32, %c0_i32_0 : i32, i32
  }
  func.func @transform_14(%arg0: i32, %arg1: i32, %arg2: memref<16xi32, #tpu.memory_space<smem>>, %arg3: memref<16xi32, #tpu.memory_space<smem>>) -> (i32, i32) {
    %c0_i32 = arith.constant 0 : i32
    %c0_i32_0 = arith.constant 0 : i32
    %c0_i32_1 = arith.constant 0 : i32
    return %c0_i32, %c0_i32_0 : i32, i32
  }
  func.func @transform_15(%arg0: i32, %arg1: i32, %arg2: memref<16xi32, #tpu.memory_space<smem>>, %arg3: memref<16xi32, #tpu.memory_space<smem>>) -> (i32, i32) {
    %c0_i32 = arith.constant 0 : i32
    %c0_i32_0 = arith.constant 0 : i32
    %c0_i32_1 = arith.constant 0 : i32
    return %c0_i32, %c0_i32_0 : i32, i32
  }
  func.func @transform_16(%arg0: i32, %arg1: i32, %arg2: memref<16xi32, #tpu.memory_space<smem>>, %arg3: memref<16xi32, #tpu.memory_space<smem>>) -> (i32, i32) {
    %c0_i32 = arith.constant 0 : i32
    %c0_i32_0 = arith.constant 0 : i32
    %c0_i32_1 = arith.constant 0 : i32
    return %c0_i32, %c0_i32_0 : i32, i32
  }
  func.func @transform_17(%arg0: i32, %arg1: i32, %arg2: memref<16xi32, #tpu.memory_space<smem>>, %arg3: memref<16xi32, #tpu.memory_space<smem>>) -> (i32, i32) {
    %c0_i32 = arith.constant 0 : i32
    %c0_i32_0 = arith.constant 0 : i32
    %c0_i32_1 = arith.constant 0 : i32
    return %c0_i32, %c0_i32_0 : i32, i32
  }
  func.func @transform_18(%arg0: i32, %arg1: i32, %arg2: memref<16xi32, #tpu.memory_space<smem>>, %arg3: memref<16xi32, #tpu.memory_space<smem>>) -> (i32, i32) {
    %c0_i32 = arith.constant 0 : i32
    %c0_i32_0 = arith.constant 0 : i32
    %c0_i32_1 = arith.constant 0 : i32
    return %c0_i32, %c0_i32_0 : i32, i32
  }
  func.func @transform_19(%arg0: i32, %arg1: i32, %arg2: memref<16xi32, #tpu.memory_space<smem>>, %arg3: memref<16xi32, #tpu.memory_space<smem>>) -> (i32, i32) {
    %c0_i32 = arith.constant 0 : i32
    %c0_i32_0 = arith.constant 0 : i32
    %c0_i32_1 = arith.constant 0 : i32
    return %c0_i32, %c0_i32_0 : i32, i32
  }
  func.func @transform_20(%arg0: i32, %arg1: i32, %arg2: memref<16xi32, #tpu.memory_space<smem>>, %arg3: memref<16xi32, #tpu.memory_space<smem>>) -> (i32, i32) {
    %c0_i32 = arith.constant 0 : i32
    %0 = arith.minsi %arg1, %c0_i32 : i32
    %c0_i32_0 = arith.constant 0 : i32
    %c0_i32_1 = arith.constant 0 : i32
    return %0, %c0_i32_0 : i32, i32
  }
}

</mosaic_0001>

<llo_original>
// kernel: tpu_custom_call.1
$region0: #{tpu_custom_call.1}
  #allocation0 [shape = 'u32[]', space=smem, size = 0x4, offset = 0x4, fixed_abs, tag = 'smem constant byte address 0x4 - core index']
  #allocation1 [shape = 'u32[72,128]{1,0:T(1,128)}', space=vmem, size = 0x9000, scoped, tag = 'internal scratch']
  #allocation2 [shape = 'f32[8,32]{1,0:T(8,128)}', space=vmem, size = 0x1000, scoped, tag = 'scratch operand']
  #allocation3 [shape = 'f32[8,32]{1,0:T(8,128)}', space=vmem, size = 0x1000, scoped, tag = 'scratch operand']
  #allocation4 [shape = 'f32[8,32]{1,0:T(8,128)}', space=vmem, size = 0x1000, scoped, tag = 'scratch operand']
  #allocation5 [shape = 'f32[8,32]{1,0:T(8,128)}', space=vmem, size = 0x1000, scoped, tag = 'scratch operand']
  #allocation6 [shape = 'f32[8,32]{1,0:T(8,128)}', space=vmem, size = 0x1000, scoped, tag = 'scratch operand']
  #allocation7 [shape = 'f32[8,32]{1,0:T(8,128)}', space=vmem, size = 0x1000, scoped, tag = 'scratch operand']
  #allocation8 [shape = 'f32[8,32]{1,0:T(8,128)}', space=vmem, size = 0x1000, scoped, tag = 'scratch operand']
  #allocation9 [shape = 'f32[16,32]{1,0:T(8,128)}', space=vmem, size = 0x2000, scoped, tag = 'scratch operand']
  #allocation10 [shape = 's32[1]{0}', space=sflag, size = 0x4, scoped, tag = 'scoped memory for tpu_custom_call.1']
  #allocation11 [shape = 'u8[512]{0}', space=smem, size = 0x200, scoped, tag = 'prefetched SMEM operand 0']
  #allocation12 [shape = 'u8[512]{0}', space=smem, size = 0x200, scoped, tag = 'prefetched SMEM operand 1']
  %s0 = inlined_call_operand.hbm [shape: s32[16], index: 0, kind: input, shape index: {}]
  %s1 = inlined_call_operand.hbm [shape: s32[16], index: 1, kind: input, shape index: {}]
  %s2 = inlined_call_operand.vmem [shape: f32[8,2], index: 2, kind: input, shape index: {}]
  %s3 = inlined_call_operand.vmem [shape: f32[2,32], index: 3, kind: input, shape index: {}]
  %s4 = inlined_call_operand.hbm [shape: f32[1,32], index: 4, kind: input, shape index: {}]
  %s5 = inlined_call_operand.vmem [shape: f32[32,32], index: 5, kind: input, shape index: {}]
  %s6 = inlined_call_operand.vmem [shape: f32[2,32], index: 6, kind: input, shape index: {}]
  %s7 = inlined_call_operand.hbm [shape: f32[1,32], index: 7, kind: input, shape index: {}]
  %s8 = inlined_call_operand.hbm [shape: f32[32,32], index: 8, kind: input, shape index: {}]
  %s9 = inlined_call_operand.vmem [shape: f32[2,32], index: 9, kind: input, shape index: {}]
  %s10 = inlined_call_operand.vmem [shape: f32[32,4], index: 10, kind: input, shape index: {}]
  %s11 = inlined_call_operand.vmem [shape: f32[1,4], index: 11, kind: input, shape index: {}]
  %s12 = inlined_call_operand.vmem [shape: f32[4,32], index: 12, kind: input, shape index: {}]
  %s13 = inlined_call_operand.hbm [shape: f32[32,32], index: 13, kind: input, shape index: {}]
  %s14 = inlined_call_operand.vmem [shape: f32[2,32], index: 14, kind: input, shape index: {}]
  %s15 = inlined_call_operand.hbm [shape: f32[32,32], index: 15, kind: input, shape index: {}]
  %s16 = inlined_call_operand.vmem [shape: f32[2,32], index: 16, kind: input, shape index: {}]
  %s17 = inlined_call_operand.hbm [shape: f32[32,32], index: 17, kind: input, shape index: {}]
  %s18 = inlined_call_operand.vmem [shape: f32[2,32], index: 18, kind: input, shape index: {}]
  %s19 = inlined_call_operand.vmem [shape: f32[1,32], index: 19, kind: input, shape index: {}]
  %s20 = inlined_call_operand.hbm [shape: f32[32,32], index: 20, kind: input, shape index: {}]
  %s21 = inlined_call_operand.vmem [shape: f32[1,32], index: 21, kind: input, shape index: {}]
  %s22 = inlined_call_operand.vmem [shape: f32[16,4], index: 22, kind: output, shape index: {}]
  %s23 = sld [smem:[#allocation0]]
  $region179: #{tpu_custom_call.1} parent=0
    _
  %s25 = ssub.s32 1, %s23
  %s26 = scalar_select 0, %s25, %s23
  %s28 = sshll.u32 %s0, 4
  %s29 = int_to_ptr.hbm [resolvable:$true] %s28
  %31 = dma.hbm_to_smem %s29, 16, [#allocation11], [#allocation10]
  %s33 = sshll.u32 %s1, 4
  %s34 = int_to_ptr.hbm [resolvable:$true] %s33
  %36 = dma.hbm_to_smem %s34, 16, [#allocation12], [#allocation10]
  %38 = dma.done [#allocation10], 32
  %39 = sfence
  $region1: #{tpu_custom_call.1} parent=0
    #allocation13 [shape = 'u8[512]{0}', space=vmem, size = 0x400, scoped, tag = 'input window, operand 4, single buffered']
    #allocation14 [shape = 's32[2]{0}', space=sflag, size = 0x8, scoped, tag = 'scoped memory for tpu_custom_call.1']
    #allocation15 [shape = 'u8[512]{0}', space=vmem, size = 0x400, scoped, tag = 'input window, operand 7, single buffered']
    #allocation16 [shape = 's32[1]{0}', space=sflag, size = 0x4, scoped, tag = 'scoped memory for tpu_custom_call.1']
    #allocation17 [shape = 'u8[16384]{0}', space=vmem, size = 0x4000, scoped, tag = 'input window, operand 8, single buffered']
    #allocation18 [shape = 'u8[16384]{0}', space=vmem, size = 0x4000, scoped, tag = 'input window, operand 13, single buffered']
    #allocation19 [shape = 's32[1]{0}', space=sflag, size = 0x4, scoped, tag = 'scoped memory for tpu_custom_call.1']
    #allocation20 [shape = 'u8[16384]{0}', space=vmem, size = 0x4000, scoped, tag = 'input window, operand 15, single buffered']
    #allocation21 [shape = 'u8[16384]{0}', space=vmem, size = 0x4000, scoped, tag = 'input window, operand 17, single buffered']
    #allocation22 [shape = 's32[1]{0}', space=sflag, size = 0x4, scoped, tag = 'scoped memory for tpu_custom_call.1']
    #allocation23 [shape = 'u8[16384]{0}', space=vmem, size = 0x4000, scoped, tag = 'input window, operand 20, single buffered']
    %40 = vsyncpa [#allocation14], 0
    %41 = vsyncpa [#allocation16], 0
    %42 = vsyncpa [#allocation19], 0
    %43 = vsyncpa [#allocation22], 0
    loop: start=0, step=1, limit=10
    $region2: #{tpu_custom_call.1} parent=1 // loop_pre_header
      _
    $region3: #{tpu_custom_call.1} parent=1 // loop_header
      %s45 = sphi 0, %s49
      %p46 = scmp.ge.s32.totalorder %s45, 10
      %s52 = sphi 0, %s64
      %s53 = sphi 0, %s60
      %s54 = sphi 0, %s52
      %s55 = sphi 0, %s53
      %s56 = sphi 0, %s54
      %s57 = sphi 0, %s55
      %s65 = sphi 0, %s65
      %s67 = sphi 0, %s65
      %s68 = sphi 0, %s67
      %s82 = sphi 0, %s68
      %s86 = sphi 0, %s86
      %s88 = sphi 0, %s86
      %s89 = sphi 0, %s88
      %s103 = sphi 0, %s89
      %s107 = sphi 0, %s107
      %s109 = sphi 0, %s107
      %s110 = sphi 0, %s109
      %s124 = sphi 0, %s110
      %s128 = sphi 0, %s128
      %s130 = sphi 0, %s128
      %s131 = sphi 0, %s130
      %s145 = sphi 0, %s131
      %s149 = sphi 0, %s149
      %s151 = sphi 0, %s149
      %s152 = sphi 0, %s151
      %s166 = sphi 0, %s152
      %s170 = sphi 0, %s170
      %s172 = sphi 0, %s170
      %s173 = sphi 0, %s172
      %s187 = sphi 0, %s173
      %s191 = sphi 0, %s191
      %s193 = sphi 0, %s191
      %s194 = sphi 0, %s193
      %s208 = sphi 0, %s194
      %s212 = sphi 0, %s212
      %s214 = sphi 0, %s212
      %s215 = sphi 0, %s214
      %s229 = sphi 0, %s215
      %s233 = sphi 0, %s233
      %s235 = sphi 0, %s233
      %s236 = sphi 0, %s235
      %s250 = sphi 0, %s236
      %s254 = sphi 0, %s254
      %s256 = sphi 0, %s254
      %s257 = sphi 0, %s256
      %s271 = sphi 0, %s257
      %s275 = sphi 0, %s275
      %s277 = sphi 0, %s275
      %s278 = sphi 0, %s277
      %s292 = sphi 0, %s278
      %s296 = sphi 0, %s296
      %s298 = sphi 0, %s296
      %s299 = sphi 0, %s298
      %s313 = sphi 0, %s299
      %s317 = sphi 0, %s317
      %s319 = sphi 0, %s317
      %s320 = sphi 0, %s319
      %s334 = sphi 0, %s320
      %s338 = sphi 0, %s338
      %s340 = sphi 0, %s338
      %s341 = sphi 0, %s340
      %s355 = sphi 0, %s341
      %s359 = sphi 0, %s359
      %s361 = sphi 0, %s359
      %s362 = sphi 0, %s361
      %s376 = sphi 0, %s362
      %s380 = sphi 0, %s380
      %s382 = sphi 0, %s380
      %s383 = sphi 0, %s382
      %s397 = sphi 0, %s383
      %s401 = sphi 0, %s401
      %s403 = sphi 0, %s401
      %s404 = sphi 0, %s403
      %s418 = sphi 0, %s404
      %s422 = sphi 0, %s422
      %s424 = sphi 0, %s422
      %s425 = sphi 0, %s424
      %s439 = sphi 0, %s425
      %s443 = sphi 0, %s443
      %s445 = sphi 0, %s443
      %s446 = sphi 0, %s445
      %s460 = sphi 0, %s446
      %s464 = sphi 0, %s464
      %s466 = sphi 0, %s464
      %s467 = sphi 0, %s466
      %s481 = sphi 0, %s467
      %s491 = sphi 0, %s493
      %s494 = sphi 0, %s491
      %s495 = sphi 0, %s494
      %s511 = sphi 0, %s495
    $region4: #{tpu_custom_call.1} parent=1 // loop_header_branch
      %48 = sbr.rel (%p46) target = $region8
    $region5: #{tpu_custom_call.1} parent=1 // loop_body
      %s50 = ssub.s32 %s45, 1
      %s51 = ssub.s32 %s45, 2
      %s58 = sadd.s32 1, %s53
      %p59 = scmp.ge.s32.totalorder %s58, 2
      %s60 = scalar_select %p59, 0, %s58
      %s61 = sadd.s32 1, %s52
      %s62 = scalar_select %p59, %s61, %s52
      %p63 = scmp.ge.s32.totalorder %s62, 4
      %s64 = scalar_select %p63, 0, %s62
      %s66 = sadd.s32 %s65, 1
      %p69 = scmp.eq.s32.totalorder %s45, 7
      %p70 = scmp.ne.s32.totalorder %s65, %s67
      %p71 = scmp.eq.s32.totalorder %s45, 0
      %p72 = por %p70, %p71
      %p73 = scmp.ne.s32.totalorder %s65, %s67
      %p74 = scmp.eq.s32.totalorder %s50, 7
      %p75 = por %p73, %p74
      %p76 = scmp.ne.s32.totalorder %s67, %s68
      %p77 = scmp.eq.s32.totalorder %s50, 0
      %p78 = por %p76, %p77
      %p79 = scmp.ne.s32.totalorder %s67, %s68
      %p80 = scmp.eq.s32.totalorder %s51, 7
      %p81 = por %p79, %p80
      %p83 = scmp.ne.s32.totalorder %s68, %s82
      %p84 = scmp.eq.s32.totalorder %s51, 0
      %p85 = por %p83, %p84
      %s87 = sadd.s32 %s86, 1
      %p90 = scmp.eq.s32.totalorder %s45, 7
      %p91 = scmp.ne.s32.totalorder %s86, %s88
      %p92 = scmp.eq.s32.totalorder %s45, 0
      %p93 = por %p91, %p92
      %p94 = scmp.ne.s32.totalorder %s86, %s88
      %p95 = scmp.eq.s32.totalorder %s50, 7
      %p96 = por %p94, %p95
      %p97 = scmp.ne.s32.totalorder %s88, %s89
      %p98 = scmp.eq.s32.totalorder %s50, 0
      %p99 = por %p97, %p98
      %p100 = scmp.ne.s32.totalorder %s88, %s89
      %p101 = scmp.eq.s32.totalorder %s51, 7
      %p102 = por %p100, %p101
      %p104 = scmp.ne.s32.totalorder %s89, %s103
      %p105 = scmp.eq.s32.totalorder %s51, 0
      %p106 = por %p104, %p105
      %s108 = sadd.s32 %s107, 1
      %p111 = scmp.eq.s32.totalorder %s45, 7
      %p112 = scmp.ne.s32.totalorder %s107, %s109
      %p113 = scmp.eq.s32.totalorder %s45, 0
      %p114 = por %p112, %p113
      %p115 = scmp.ne.s32.totalorder %s107, %s109
      %p116 = scmp.eq.s32.totalorder %s50, 7
      %p117 = por %p115, %p116
      %p118 = scmp.ne.s32.totalorder %s109, %s110
      %p119 = scmp.eq.s32.totalorder %s50, 0
      %p120 = por %p118, %p119
      %p121 = scmp.ne.s32.totalorder %s109, %s110
      %p122 = scmp.eq.s32.totalorder %s51, 7
      %p123 = por %p121, %p122
      %p125 = scmp.ne.s32.totalorder %s110, %s124
      %p126 = scmp.eq.s32.totalorder %s51, 0
      %p127 = por %p125, %p126
      %s129 = sadd.s32 %s128, 1
      %p132 = scmp.eq.s32.totalorder %s45, 7
      %p133 = scmp.ne.s32.totalorder %s128, %s130
      %p134 = scmp.eq.s32.totalorder %s45, 0
      %p135 = por %p133, %p134
      %p136 = scmp.ne.s32.totalorder %s128, %s130
      %p137 = scmp.eq.s32.totalorder %s50, 7
      %p138 = por %p136, %p137
      %p139 = scmp.ne.s32.totalorder %s130, %s131
      %p140 = scmp.eq.s32.totalorder %s50, 0
      %p141 = por %p139, %p140
      %p142 = scmp.ne.s32.totalorder %s130, %s131
      %p143 = scmp.eq.s32.totalorder %s51, 7
      %p144 = por %p142, %p143
      %p146 = scmp.ne.s32.totalorder %s131, %s145
      %p147 = scmp.eq.s32.totalorder %s51, 0
      %p148 = por %p146, %p147
      %s150 = sadd.s32 %s149, 1
      %p153 = scmp.eq.s32.totalorder %s45, 7
      %p154 = scmp.ne.s32.totalorder %s149, %s151
      %p155 = scmp.eq.s32.totalorder %s45, 0
      %p156 = por %p154, %p155
      %p157 = scmp.ne.s32.totalorder %s149, %s151
      %p158 = scmp.eq.s32.totalorder %s50, 7
      %p159 = por %p157, %p158
      %p160 = scmp.ne.s32.totalorder %s151, %s152
      %p161 = scmp.eq.s32.totalorder %s50, 0
      %p162 = por %p160, %p161
      %p163 = scmp.ne.s32.totalorder %s151, %s152
      %p164 = scmp.eq.s32.totalorder %s51, 7
      %p165 = por %p163, %p164
      %p167 = scmp.ne.s32.totalorder %s152, %s166
      %p168 = scmp.eq.s32.totalorder %s51, 0
      %p169 = por %p167, %p168
      %s171 = sadd.s32 %s170, 1
      %p174 = scmp.eq.s32.totalorder %s45, 7
      %p175 = scmp.ne.s32.totalorder %s170, %s172
      %p176 = scmp.eq.s32.totalorder %s45, 0
      %p177 = por %p175, %p176
      %p178 = scmp.ne.s32.totalorder %s170, %s172
      %p179 = scmp.eq.s32.totalorder %s50, 7
      %p180 = por %p178, %p179
      %p181 = scmp.ne.s32.totalorder %s172, %s173
      %p182 = scmp.eq.s32.totalorder %s50, 0
      %p183 = por %p181, %p182
      %p184 = scmp.ne.s32.totalorder %s172, %s173
      %p185 = scmp.eq.s32.totalorder %s51, 7
      %p186 = por %p184, %p185
      %p188 = scmp.ne.s32.totalorder %s173, %s187
      %p189 = scmp.eq.s32.totalorder %s51, 0
      %p190 = por %p188, %p189
      %s192 = sadd.s32 %s191, 1
      %p195 = scmp.eq.s32.totalorder %s45, 7
      %p196 = scmp.ne.s32.totalorder %s191, %s193
      %p197 = scmp.eq.s32.totalorder %s45, 0
      %p198 = por %p196, %p197
      %p199 = scmp.ne.s32.totalorder %s191, %s193
      %p200 = scmp.eq.s32.totalorder %s50, 7
      %p201 = por %p199, %p200
      %p202 = scmp.ne.s32.totalorder %s193, %s194
      %p203 = scmp.eq.s32.totalorder %s50, 0
      %p204 = por %p202, %p203
      %p205 = scmp.ne.s32.totalorder %s193, %s194
      %p206 = scmp.eq.s32.totalorder %s51, 7
      %p207 = por %p205, %p206
      %p209 = scmp.ne.s32.totalorder %s194, %s208
      %p210 = scmp.eq.s32.totalorder %s51, 0
      %p211 = por %p209, %p210
      %s213 = sadd.s32 %s212, 1
      %p216 = scmp.eq.s32.totalorder %s45, 7
      %p217 = scmp.ne.s32.totalorder %s212, %s214
      %p218 = scmp.eq.s32.totalorder %s45, 0
      %p219 = por %p217, %p218
      %p220 = scmp.ne.s32.totalorder %s212, %s214
      %p221 = scmp.eq.s32.totalorder %s50, 7
      %p222 = por %p220, %p221
      %p223 = scmp.ne.s32.totalorder %s214, %s215
      %p224 = scmp.eq.s32.totalorder %s50, 0
      %p225 = por %p223, %p224
      %p226 = scmp.ne.s32.totalorder %s214, %s215
      %p227 = scmp.eq.s32.totalorder %s51, 7
      %p228 = por %p226, %p227
      %p230 = scmp.ne.s32.totalorder %s215, %s229
      %p231 = scmp.eq.s32.totalorder %s51, 0
      %p232 = por %p230, %p231
      %s234 = sadd.s32 %s233, 1
      %p237 = scmp.eq.s32.totalorder %s45, 7
      %p238 = scmp.ne.s32.totalorder %s233, %s235
      %p239 = scmp.eq.s32.totalorder %s45, 0
      %p240 = por %p238, %p239
      %p241 = scmp.ne.s32.totalorder %s233, %s235
      %p242 = scmp.eq.s32.totalorder %s50, 7
      %p243 = por %p241, %p242
      %p244 = scmp.ne.s32.totalorder %s235, %s236
      %p245 = scmp.eq.s32.totalorder %s50, 0
      %p246 = por %p244, %p245
      %p247 = scmp.ne.s32.totalorder %s235, %s236
      %p248 = scmp.eq.s32.totalorder %s51, 7
      %p249 = por %p247, %p248
      %p251 = scmp.ne.s32.totalorder %s236, %s250
      %p252 = scmp.eq.s32.totalorder %s51, 0
      %p253 = por %p251, %p252
      %s255 = sadd.s32 %s254, 1
      %p258 = scmp.eq.s32.totalorder %s45, 7
      %p259 = scmp.ne.s32.totalorder %s254, %s256
      %p260 = scmp.eq.s32.totalorder %s45, 0
      %p261 = por %p259, %p260
      %p262 = scmp.ne.s32.totalorder %s254, %s256
      %p263 = scmp.eq.s32.totalorder %s50, 7
      %p264 = por %p262, %p263
      %p265 = scmp.ne.s32.totalorder %s256, %s257
      %p266 = scmp.eq.s32.totalorder %s50, 0
      %p267 = por %p265, %p266
      %p268 = scmp.ne.s32.totalorder %s256, %s257
      %p269 = scmp.eq.s32.totalorder %s51, 7
      %p270 = por %p268, %p269
      %p272 = scmp.ne.s32.totalorder %s257, %s271
      %p273 = scmp.eq.s32.totalorder %s51, 0
      %p274 = por %p272, %p273
      %s276 = sadd.s32 %s275, 1
      %p279 = scmp.eq.s32.totalorder %s45, 7
      %p280 = scmp.ne.s32.totalorder %s275, %s277
      %p281 = scmp.eq.s32.totalorder %s45, 0
      %p282 = por %p280, %p281
      %p283 = scmp.ne.s32.totalorder %s275, %s277
      %p284 = scmp.eq.s32.totalorder %s50, 7
      %p285 = por %p283, %p284
      %p286 = scmp.ne.s32.totalorder %s277, %s278
      %p287 = scmp.eq.s32.totalorder %s50, 0
      %p288 = por %p286, %p287
      %p289 = scmp.ne.s32.totalorder %s277, %s278
      %p290 = scmp.eq.s32.totalorder %s51, 7
      %p291 = por %p289, %p290
      %p293 = scmp.ne.s32.totalorder %s278, %s292
      %p294 = scmp.eq.s32.totalorder %s51, 0
      %p295 = por %p293, %p294
      %s297 = sadd.s32 %s296, 1
      %p300 = scmp.eq.s32.totalorder %s45, 7
      %p301 = scmp.ne.s32.totalorder %s296, %s298
      %p302 = scmp.eq.s32.totalorder %s45, 0
      %p303 = por %p301, %p302
      %p304 = scmp.ne.s32.totalorder %s296, %s298
      %p305 = scmp.eq.s32.totalorder %s50, 7
      %p306 = por %p304, %p305
      %p307 = scmp.ne.s32.totalorder %s298, %s299
      %p308 = scmp.eq.s32.totalorder %s50, 0
      %p309 = por %p307, %p308
      %p310 = scmp.ne.s32.totalorder %s298, %s299
      %p311 = scmp.eq.s32.totalorder %s51, 7
      %p312 = por %p310, %p311
      %p314 = scmp.ne.s32.totalorder %s299, %s313
      %p315 = scmp.eq.s32.totalorder %s51, 0
      %p316 = por %p314, %p315
      %s318 = sadd.s32 %s317, 1
      %p321 = scmp.eq.s32.totalorder %s45, 7
      %p322 = scmp.ne.s32.totalorder %s317, %s319
      %p323 = scmp.eq.s32.totalorder %s45, 0
      %p324 = por %p322, %p323
      %p325 = scmp.ne.s32.totalorder %s317, %s319
      %p326 = scmp.eq.s32.totalorder %s50, 7
      %p327 = por %p325, %p326
      %p328 = scmp.ne.s32.totalorder %s319, %s320
      %p329 = scmp.eq.s32.totalorder %s50, 0
      %p330 = por %p328, %p329
      %p331 = scmp.ne.s32.totalorder %s319, %s320
      %p332 = scmp.eq.s32.totalorder %s51, 7
      %p333 = por %p331, %p332
      %p335 = scmp.ne.s32.totalorder %s320, %s334
      %p336 = scmp.eq.s32.totalorder %s51, 0
      %p337 = por %p335, %p336
      %s339 = sadd.s32 %s338, 1
      %p342 = scmp.eq.s32.totalorder %s45, 7
      %p343 = scmp.ne.s32.totalorder %s338, %s340
      %p344 = scmp.eq.s32.totalorder %s45, 0
      %p345 = por %p343, %p344
      %p346 = scmp.ne.s32.totalorder %s338, %s340
      %p347 = scmp.eq.s32.totalorder %s50, 7
      %p348 = por %p346, %p347
      %p349 = scmp.ne.s32.totalorder %s340, %s341
      %p350 = scmp.eq.s32.totalorder %s50, 0
      %p351 = por %p349, %p350
      %p352 = scmp.ne.s32.totalorder %s340, %s341
      %p353 = scmp.eq.s32.totalorder %s51, 7
      %p354 = por %p352, %p353
      %p356 = scmp.ne.s32.totalorder %s341, %s355
      %p357 = scmp.eq.s32.totalorder %s51, 0
      %p358 = por %p356, %p357
      %s360 = sadd.s32 %s359, 1
      %p363 = scmp.eq.s32.totalorder %s45, 7
      %p364 = scmp.ne.s32.totalorder %s359, %s361
      %p365 = scmp.eq.s32.totalorder %s45, 0
      %p366 = por %p364, %p365
      %p367 = scmp.ne.s32.totalorder %s359, %s361
      %p368 = scmp.eq.s32.totalorder %s50, 7
      %p369 = por %p367, %p368
      %p370 = scmp.ne.s32.totalorder %s361, %s362
      %p371 = scmp.eq.s32.totalorder %s50, 0
      %p372 = por %p370, %p371
      %p373 = scmp.ne.s32.totalorder %s361, %s362
      %p374 = scmp.eq.s32.totalorder %s51, 7
      %p375 = por %p373, %p374
      %p377 = scmp.ne.s32.totalorder %s362, %s376
      %p378 = scmp.eq.s32.totalorder %s51, 0
      %p379 = por %p377, %p378
      %s381 = sadd.s32 %s380, 1
      %p384 = scmp.eq.s32.totalorder %s45, 7
      %p385 = scmp.ne.s32.totalorder %s380, %s382
      %p386 = scmp.eq.s32.totalorder %s45, 0
      %p387 = por %p385, %p386
      %p388 = scmp.ne.s32.totalorder %s380, %s382
      %p389 = scmp.eq.s32.totalorder %s50, 7
      %p390 = por %p388, %p389
      %p391 = scmp.ne.s32.totalorder %s382, %s383
      %p392 = scmp.eq.s32.totalorder %s50, 0
      %p393 = por %p391, %p392
      %p394 = scmp.ne.s32.totalorder %s382, %s383
      %p395 = scmp.eq.s32.totalorder %s51, 7
      %p396 = por %p394, %p395
      %p398 = scmp.ne.s32.totalorder %s383, %s397
      %p399 = scmp.eq.s32.totalorder %s51, 0
      %p400 = por %p398, %p399
      %s402 = sadd.s32 %s401, 1
      %p405 = scmp.eq.s32.totalorder %s45, 7
      %p406 = scmp.ne.s32.totalorder %s401, %s403
      %p407 = scmp.eq.s32.totalorder %s45, 0
      %p408 = por %p406, %p407
      %p409 = scmp.ne.s32.totalorder %s401, %s403
      %p410 = scmp.eq.s32.totalorder %s50, 7
      %p411 = por %p409, %p410
      %p412 = scmp.ne.s32.totalorder %s403, %s404
      %p413 = scmp.eq.s32.totalorder %s50, 0
      %p414 = por %p412, %p413
      %p415 = scmp.ne.s32.totalorder %s403, %s404
      %p416 = scmp.eq.s32.totalorder %s51, 7
      %p417 = por %p415, %p416
      %p419 = scmp.ne.s32.totalorder %s404, %s418
      %p420 = scmp.eq.s32.totalorder %s51, 0
      %p421 = por %p419, %p420
      %s423 = sadd.s32 %s422, 1
      %p426 = scmp.eq.s32.totalorder %s45, 7
      %p427 = scmp.ne.s32.totalorder %s422, %s424
      %p428 = scmp.eq.s32.totalorder %s45, 0
      %p429 = por %p427, %p428
      %p430 = scmp.ne.s32.totalorder %s422, %s424
      %p431 = scmp.eq.s32.totalorder %s50, 7
      %p432 = por %p430, %p431
      %p433 = scmp.ne.s32.totalorder %s424, %s425
      %p434 = scmp.eq.s32.totalorder %s50, 0
      %p435 = por %p433, %p434
      %p436 = scmp.ne.s32.totalorder %s424, %s425
      %p437 = scmp.eq.s32.totalorder %s51, 7
      %p438 = por %p436, %p437
      %p440 = scmp.ne.s32.totalorder %s425, %s439
      %p441 = scmp.eq.s32.totalorder %s51, 0
      %p442 = por %p440, %p441
      %s444 = sadd.s32 %s443, 1
      %p447 = scmp.eq.s32.totalorder %s45, 7
      %p448 = scmp.ne.s32.totalorder %s443, %s445
      %p449 = scmp.eq.s32.totalorder %s45, 0
      %p450 = por %p448, %p449
      %p451 = scmp.ne.s32.totalorder %s443, %s445
      %p452 = scmp.eq.s32.totalorder %s50, 7
      %p453 = por %p451, %p452
      %p454 = scmp.ne.s32.totalorder %s445, %s446
      %p455 = scmp.eq.s32.totalorder %s50, 0
      %p456 = por %p454, %p455
      %p457 = scmp.ne.s32.totalorder %s445, %s446
      %p458 = scmp.eq.s32.totalorder %s51, 7
      %p459 = por %p457, %p458
      %p461 = scmp.ne.s32.totalorder %s446, %s460
      %p462 = scmp.eq.s32.totalorder %s51, 0
      %p463 = por %p461, %p462
      %s465 = sadd.s32 %s464, 1
      %p468 = scmp.eq.s32.totalorder %s45, 7
      %p469 = scmp.ne.s32.totalorder %s464, %s466
      %p470 = scmp.eq.s32.totalorder %s45, 0
      %p471 = por %p469, %p470
      %p472 = scmp.ne.s32.totalorder %s464, %s466
      %p473 = scmp.eq.s32.totalorder %s50, 7
      %p474 = por %p472, %p473
      %p475 = scmp.ne.s32.totalorder %s466, %s467
      %p476 = scmp.eq.s32.totalorder %s50, 0
      %p477 = por %p475, %p476
      %p478 = scmp.ne.s32.totalorder %s466, %s467
      %p479 = scmp.eq.s32.totalorder %s51, 7
      %p480 = por %p478, %p479
      %p482 = scmp.ne.s32.totalorder %s467, %s481
      %p483 = scmp.eq.s32.totalorder %s51, 0
      %p484 = por %p482, %p483
      %p485 = scmp.lt.s32.totalorder %s53, 0
      %s486 = scalar_select %p485, %s53, 0
      %p487 = scmp.lt.s32.totalorder %s60, 0
      %s488 = scalar_select %p487, %s60, 0
      %s489 = ssub.s32 %s486, %s488
      %p490 = scmp.eq.s32.totalorder %s489, 0
      %s492 = sadd.s32 %s491, 1
      %s493 = scalar_select %p490, %s491, %s492
      %p496 = pneg %p490
      %p497 = scmp.eq.s32.totalorder %s45, 7
      %p498 = por %p496, %p497
      %p499 = scmp.ne.s32.totalorder %s491, %s494
      %p500 = scmp.eq.s32.totalorder %s45, 0
      %p501 = por %p499, %p500
      %p502 = scmp.ne.s32.totalorder %s491, %s494
      %p503 = scmp.eq.s32.totalorder %s50, 7
      %p504 = por %p502, %p503
      %p505 = scmp.ne.s32.totalorder %s494, %s495
      %p506 = scmp.eq.s32.totalorder %s50, 0
      %p507 = por %p505, %p506
      %p508 = scmp.ne.s32.totalorder %s494, %s495
      %p509 = scmp.eq.s32.totalorder %s51, 7
      %p510 = por %p508, %p509
      %p512 = scmp.ne.s32.totalorder %s495, %s511
      %p513 = scmp.eq.s32.totalorder %s51, 0
      %p514 = por %p512, %p513
      %p515 = scmp.le.s32.totalorder 1, %s45
      %p516 = scmp.lt.s32.totalorder %s45, 9
      %p517 = pnand %p515, %p516
      %p518 = pneg %p517
      // Predicated region
      $region9: #{tpu_custom_call.1} parent=5 // pred_check
        _
      $region10: #{tpu_custom_call.1} parent=5 // pred_check_branch
        %520 = sbr.rel (%p517) target = $region12
      $region11: #{tpu_custom_call.1} parent=5 // pred_region
        %s521 = ssub.s32 %s45, 1
        // Predicated region
        $region13: #{tpu_custom_call.1} parent=11 // pred_check
          %p522 = pneg %p78
        $region14: #{tpu_custom_call.1} parent=11 // pred_check_branch
          %524 = sbr.rel (%p522) target = $region16
        $region15: #{tpu_custom_call.1} parent=11 // pred_region
          _
        $region16: #{tpu_custom_call.1} parent=11 // pred_fallthru
          _
        // Predicated region
        $region17: #{tpu_custom_call.1} parent=11 // pred_check
          %p525 = pneg %p99
        $region18: #{tpu_custom_call.1} parent=11 // pred_check_branch
          %527 = sbr.rel (%p525) target = $region20
        $region19: #{tpu_custom_call.1} parent=11 // pred_region
          _
        $region20: #{tpu_custom_call.1} parent=11 // pred_fallthru
          _
        // Predicated region
        $region21: #{tpu_custom_call.1} parent=11 // pred_check
          %p528 = pneg %p120
        $region22: #{tpu_custom_call.1} parent=11 // pred_check_branch
          %530 = sbr.rel (%p528) target = $region24
        $region23: #{tpu_custom_call.1} parent=11 // pred_region
          %532 = vsyncadd [#allocation14], 0
          %s534 = sshll.u32 %s4, 4
          %s535 = int_to_ptr.hbm [resolvable:$true] %s534
          %s536 = sshll.u32 [#allocation13], 4
          %s537 = int_to_ptr.vmem [resolvable:$true] %s536
          %539 = dma.hbm_to_vmem [thread:$0]  %s535, 16, %s537, [#allocation14]
        $region24: #{tpu_custom_call.1} parent=11 // pred_fallthru
          _
        // Predicated region
        $region25: #{tpu_custom_call.1} parent=11 // pred_check
          %p540 = pneg %p141
        $region26: #{tpu_custom_call.1} parent=11 // pred_check_branch
          %542 = sbr.rel (%p540) target = $region28
        $region27: #{tpu_custom_call.1} parent=11 // pred_region
          _
        $region28: #{tpu_custom_call.1} parent=11 // pred_fallthru
          _
        // Predicated region
        $region29: #{tpu_custom_call.1} parent=11 // pred_check
          %p543 = pneg %p162
        $region30: #{tpu_custom_call.1} parent=11 // pred_check_branch
          %545 = sbr.rel (%p543) target = $region32
        $region31: #{tpu_custom_call.1} parent=11 // pred_region
          _
        $region32: #{tpu_custom_call.1} parent=11 // pred_fallthru
          _
        // Predicated region
        $region33: #{tpu_custom_call.1} parent=11 // pred_check
          %p546 = pneg %p183
        $region34: #{tpu_custom_call.1} parent=11 // pred_check_branch
          %548 = sbr.rel (%p546) target = $region36
        $region35: #{tpu_custom_call.1} parent=11 // pred_region
          %550 = vsyncadd [#allocation16], 0
          %s552 = sshll.u32 %s7, 4
          %s553 = int_to_ptr.hbm [resolvable:$true] %s552
          %s554 = sshll.u32 [#allocation15], 4
          %s555 = int_to_ptr.vmem [resolvable:$true] %s554
          %557 = dma.hbm_to_vmem [thread:$0]  %s553, 16, %s555, [#allocation16]
        $region36: #{tpu_custom_call.1} parent=11 // pred_fallthru
          _
        // Predicated region
        $region37: #{tpu_custom_call.1} parent=11 // pred_check
          %p558 = pneg %p204
        $region38: #{tpu_custom_call.1} parent=11 // pred_check_branch
          %560 = sbr.rel (%p558) target = $region40
        $region39: #{tpu_custom_call.1} parent=11 // pred_region
          %562 = vsyncadd [#allocation16], 0
          %s563 = sshll.u32 %s8, 4
          %s564 = int_to_ptr.hbm [resolvable:$true] %s563
          %s565 = sshll.u32 [#allocation17], 4
          %s566 = int_to_ptr.vmem [resolvable:$true] %s565
          %571 = dma.hbm_to_vmem [thread:$0]  %s564, 512, %s566, [#allocation16], 128, 128, 8
        $region40: #{tpu_custom_call.1} parent=11 // pred_fallthru
          _
        // Predicated region
        $region41: #{tpu_custom_call.1} parent=11 // pred_check
          %p572 = pneg %p225
        $region42: #{tpu_custom_call.1} parent=11 // pred_check_branch
          %574 = sbr.rel (%p572) target = $region44
        $region43: #{tpu_custom_call.1} parent=11 // pred_region
          _
        $region44: #{tpu_custom_call.1} parent=11 // pred_fallthru
          _
        // Predicated region
        $region45: #{tpu_custom_call.1} parent=11 // pred_check
          %p575 = pneg %p246
        $region46: #{tpu_custom_call.1} parent=11 // pred_check_branch
          %577 = sbr.rel (%p575) target = $region48
        $region47: #{tpu_custom_call.1} parent=11 // pred_region
          _
        $region48: #{tpu_custom_call.1} parent=11 // pred_fallthru
          _
        // Predicated region
        $region49: #{tpu_custom_call.1} parent=11 // pred_check
          %p578 = pneg %p267
        $region50: #{tpu_custom_call.1} parent=11 // pred_check_branch
          %580 = sbr.rel (%p578) target = $region52
        $region51: #{tpu_custom_call.1} parent=11 // pred_region
          _
        $region52: #{tpu_custom_call.1} parent=11 // pred_fallthru
          _
        // Predicated region
        $region53: #{tpu_custom_call.1} parent=11 // pred_check
          %p581 = pneg %p288
        $region54: #{tpu_custom_call.1} parent=11 // pred_check_branch
          %583 = sbr.rel (%p581) target = $region56
        $region55: #{tpu_custom_call.1} parent=11 // pred_region
          _
        $region56: #{tpu_custom_call.1} parent=11 // pred_fallthru
          _
        // Predicated region
        $region57: #{tpu_custom_call.1} parent=11 // pred_check
          %p584 = pneg %p309
        $region58: #{tpu_custom_call.1} parent=11 // pred_check_branch
          %586 = sbr.rel (%p584) target = $region60
        $region59: #{tpu_custom_call.1} parent=11 // pred_region
          %588 = vsyncadd [#allocation19], 0
          %s589 = sshll.u32 %s13, 4
          %s590 = int_to_ptr.hbm [resolvable:$true] %s589
          %s591 = sshll.u32 [#allocation18], 4
          %s592 = int_to_ptr.vmem [resolvable:$true] %s591
          %597 = dma.hbm_to_vmem [thread:$0]  %s590, 512, %s592, [#allocation19], 128, 128, 8
        $region60: #{tpu_custom_call.1} parent=11 // pred_fallthru
          _
        // Predicated region
        $region61: #{tpu_custom_call.1} parent=11 // pred_check
          %p598 = pneg %p330
        $region62: #{tpu_custom_call.1} parent=11 // pred_check_branch
          %600 = sbr.rel (%p598) target = $region64
        $region63: #{tpu_custom_call.1} parent=11 // pred_region
          _
        $region64: #{tpu_custom_call.1} parent=11 // pred_fallthru
          _
        // Predicated region
        $region65: #{tpu_custom_call.1} parent=11 // pred_check
          %p601 = pneg %p351
        $region66: #{tpu_custom_call.1} parent=11 // pred_check_branch
          %603 = sbr.rel (%p601) target = $region68
        $region67: #{tpu_custom_call.1} parent=11 // pred_region
          %605 = vsyncadd [#allocation19], 0
          %s606 = sshll.u32 %s15, 4
          %s607 = int_to_ptr.hbm [resolvable:$true] %s606
          %s608 = sshll.u32 [#allocation20], 4
          %s609 = int_to_ptr.vmem [resolvable:$true] %s608
          %614 = dma.hbm_to_vmem [thread:$0]  %s607, 512, %s609, [#allocation19], 128, 128, 8
        $region68: #{tpu_custom_call.1} parent=11 // pred_fallthru
          _
        // Predicated region
        $region69: #{tpu_custom_call.1} parent=11 // pred_check
          %p615 = pneg %p372
        $region70: #{tpu_custom_call.1} parent=11 // pred_check_branch
          %617 = sbr.rel (%p615) target = $region72
        $region71: #{tpu_custom_call.1} parent=11 // pred_region
          _
        $region72: #{tpu_custom_call.1} parent=11 // pred_fallthru
          _
        // Predicated region
        $region73: #{tpu_custom_call.1} parent=11 // pred_check
          %p618 = pneg %p393
        $region74: #{tpu_custom_call.1} parent=11 // pred_check_branch
          %620 = sbr.rel (%p618) target = $region76
        $region75: #{tpu_custom_call.1} parent=11 // pred_region
          %622 = vsyncadd [#allocation22], 0
          %s623 = sshll.u32 %s17, 4
          %s624 = int_to_ptr.hbm [resolvable:$true] %s623
          %s625 = sshll.u32 [#allocation21], 4
          %s626 = int_to_ptr.vmem [resolvable:$true] %s625
          %631 = dma.hbm_to_vmem [thread:$0]  %s624, 512, %s626, [#allocation22], 128, 128, 8
        $region76: #{tpu_custom_call.1} parent=11 // pred_fallthru
          _
        // Predicated region
        $region77: #{tpu_custom_call.1} parent=11 // pred_check
          %p632 = pneg %p414
        $region78: #{tpu_custom_call.1} parent=11 // pred_check_branch
          %634 = sbr.rel (%p632) target = $region80
        $region79: #{tpu_custom_call.1} parent=11 // pred_region
          _
        $region80: #{tpu_custom_call.1} parent=11 // pred_fallthru
          _
        // Predicated region
        $region81: #{tpu_custom_call.1} parent=11 // pred_check
          %p635 = pneg %p435
        $region82: #{tpu_custom_call.1} parent=11 // pred_check_branch
          %637 = sbr.rel (%p635) target = $region84
        $region83: #{tpu_custom_call.1} parent=11 // pred_region
          _
        $region84: #{tpu_custom_call.1} parent=11 // pred_fallthru
          _
        // Predicated region
        $region85: #{tpu_custom_call.1} parent=11 // pred_check
          %p638 = pneg %p456
        $region86: #{tpu_custom_call.1} parent=11 // pred_check_branch
          %640 = sbr.rel (%p638) target = $region88
        $region87: #{tpu_custom_call.1} parent=11 // pred_region
          %642 = vsyncadd [#allocation22], 0
          %s643 = sshll.u32 %s20, 4
          %s644 = int_to_ptr.hbm [resolvable:$true] %s643
          %s645 = sshll.u32 [#allocation23], 4
          %s646 = int_to_ptr.vmem [resolvable:$true] %s645
          %651 = dma.hbm_to_vmem [thread:$0]  %s644, 512, %s646, [#allocation22], 128, 128, 8
        $region88: #{tpu_custom_call.1} parent=11 // pred_fallthru
          _
        // Predicated region
        $region89: #{tpu_custom_call.1} parent=11 // pred_check
          %p652 = pneg %p477
        $region90: #{tpu_custom_call.1} parent=11 // pred_check_branch
          %654 = sbr.rel (%p652) target = $region92
        $region91: #{tpu_custom_call.1} parent=11 // pred_region
          _
        $region92: #{tpu_custom_call.1} parent=11 // pred_fallthru
          _
      $region12: #{tpu_custom_call.1} parent=5 // pred_fallthru
        _
      %p655 = scmp.lt.s32.totalorder %s45, 8
      // Predicated region
      $region93: #{tpu_custom_call.1} parent=5 // pred_check
        %p656 = pneg %p655
      $region94: #{tpu_custom_call.1} parent=5 // pred_check_branch
        %658 = sbr.rel (%p656) target = $region96
      $region95: #{tpu_custom_call.1} parent=5 // pred_region
        _
      $region96: #{tpu_custom_call.1} parent=5 // pred_fallthru
        _
      %p659 = scmp.le.s32.totalorder 1, %s45
      %p660 = scmp.lt.s32.totalorder %s45, 9
      %p661 = pnand %p659, %p660
      %p662 = pneg %p661
      // Predicated region
      $region97: #{tpu_custom_call.1} parent=5 // pred_check
        _
      $region98: #{tpu_custom_call.1} parent=5 // pred_check_branch
        %664 = sbr.rel (%p661) target = $region100
      $region99: #{tpu_custom_call.1} parent=5 // pred_region
        %s665 = ssub.s32 %s45, 1
        // Predicated region
        $region101: #{tpu_custom_call.1} parent=99 // pred_check
          %p666 = pneg %p120
        $region102: #{tpu_custom_call.1} parent=99 // pred_check_branch
          %668 = sbr.rel (%p666) target = $region104
        $region103: #{tpu_custom_call.1} parent=99 // pred_region
          %670 = dma.done [#allocation14], 16
        $region104: #{tpu_custom_call.1} parent=99 // pred_fallthru
          _
        // Predicated region
        $region105: #{tpu_custom_call.1} parent=99 // pred_check
          %p671 = pneg %p183
        $region106: #{tpu_custom_call.1} parent=99 // pred_check_branch
          %673 = sbr.rel (%p671) target = $region108
        $region107: #{tpu_custom_call.1} parent=99 // pred_region
          %675 = dma.done [#allocation16], 16
        $region108: #{tpu_custom_call.1} parent=99 // pred_fallthru
          _
        // Predicated region
        $region109: #{tpu_custom_call.1} parent=99 // pred_check
          %p676 = pneg %p204
        $region110: #{tpu_custom_call.1} parent=99 // pred_check_branch
          %678 = sbr.rel (%p676) target = $region112
        $region111: #{tpu_custom_call.1} parent=99 // pred_region
          %680 = dma.done [#allocation16], 512
        $region112: #{tpu_custom_call.1} parent=99 // pred_fallthru
          _
        // Predicated region
        $region113: #{tpu_custom_call.1} parent=99 // pred_check
          %p681 = pneg %p309
        $region114: #{tpu_custom_call.1} parent=99 // pred_check_branch
          %683 = sbr.rel (%p681) target = $region116
        $region115: #{tpu_custom_call.1} parent=99 // pred_region
          %685 = dma.done [#allocation19], 512
        $region116: #{tpu_custom_call.1} parent=99 // pred_fallthru
          _
        // Predicated region
        $region117: #{tpu_custom_call.1} parent=99 // pred_check
          %p686 = pneg %p351
        $region118: #{tpu_custom_call.1} parent=99 // pred_check_branch
          %688 = sbr.rel (%p686) target = $region120
        $region119: #{tpu_custom_call.1} parent=99 // pred_region
          %690 = dma.done [#allocation19], 512
        $region120: #{tpu_custom_call.1} parent=99 // pred_fallthru
          _
        // Predicated region
        $region121: #{tpu_custom_call.1} parent=99 // pred_check
          %p691 = pneg %p393
        $region122: #{tpu_custom_call.1} parent=99 // pred_check_branch
          %693 = sbr.rel (%p691) target = $region124
        $region123: #{tpu_custom_call.1} parent=99 // pred_region
          %695 = dma.done [#allocation22], 512
        $region124: #{tpu_custom_call.1} parent=99 // pred_fallthru
          _
        // Predicated region
        $region125: #{tpu_custom_call.1} parent=99 // pred_check
          %p696 = pneg %p456
        $region126: #{tpu_custom_call.1} parent=99 // pred_check_branch
          %698 = sbr.rel (%p696) target = $region128
        $region127: #{tpu_custom_call.1} parent=99 // pred_region
          %700 = dma.done [#allocation22], 512
        $region128: #{tpu_custom_call.1} parent=99 // pred_fallthru
          _
        %p701 = pneg %p78
        %p702 = pneg %p75
        %p703 = pneg %p99
        %p704 = pneg %p96
        %p705 = pneg %p120
        %p706 = pneg %p117
        %p707 = pneg %p141
        %p708 = pneg %p138
        %p709 = pneg %p162
        %p710 = pneg %p159
        %p711 = pneg %p183
        %p712 = pneg %p180
        %p713 = pneg %p204
        %p714 = pneg %p201
        %p715 = pneg %p225
        %p716 = pneg %p222
        %p717 = pneg %p246
        %p718 = pneg %p243
        %p719 = pneg %p267
        %p720 = pneg %p264
        %p721 = pneg %p288
        %p722 = pneg %p285
        %p723 = pneg %p309
        %p724 = pneg %p306
        %p725 = pneg %p330
        %p726 = pneg %p327
        %p727 = pneg %p351
        %p728 = pneg %p348
        %p729 = pneg %p372
        %p730 = pneg %p369
        %p731 = pneg %p393
        %p732 = pneg %p390
        %p733 = pneg %p414
        %p734 = pneg %p411
        %p735 = pneg %p435
        %p736 = pneg %p432
        %p737 = pneg %p456
        %p738 = pneg %p453
        %p739 = pneg %p477
        %p740 = pneg %p474
        %p741 = pneg %p507
        %p742 = pneg %p504
        %p743 = scmp.lt.s32.totalorder %s55, 0
        %s744 = scalar_select %p743, %s55, 0
        %s745 = smul.u32 2, %s744
        %p746 = scmp.lt.s32.totalorder %s745, 1
        %s747 = scalar_select %p746, %s745, 1
        %s748 = smul.addr %s747, 8
        %s749 = scalar_lea.vmem %s22, %s748
        %p750 = scmp.lt.s32.totalorder %s55, 0
        %s751 = scalar_select %p750, %s55, 0
        %s752 = smul.u32 2, %s751
        %p753 = scmp.lt.s32.totalorder %s752, 1
        %s754 = scalar_select %p753, %s752, 1
        %s755 = smul.addr %s754, 8
        %s756 = scalar_lea.vmem %s22, %s755
        %p757 = scmp.lt.s32.totalorder %s55, 0
        %s758 = scalar_select %p757, %s55, 0
        %s759 = smul.u32 2, %s758
        %p760 = scmp.eq.s32.totalorder %s54, 0
        %p761 = scmp.eq.s32.totalorder %s55, 0
        %p762 = pnand %p760, %p761
        %p763 = pneg %p762
        // Predicated region
        $region129: #{tpu_custom_call.1} parent=99 // pred_check
          _
        $region130: #{tpu_custom_call.1} parent=99 // pred_check_branch
          %765 = sbr.rel (%p762) target = $region132
        $region131: #{tpu_custom_call.1} parent=99 // pred_region
          %v766 = vld [vmem:[%s2] sm:$0xff]
          %v767 = vld [vmem:[%s3] sm:$0x3]
          %v768 = vld [vmem:[#allocation13] sm:$0x1]
          %v770 = vperm.slane %v768, 0
          %vm772 = vcmask 15360
          %v774 = vsel %vm772, %v766, 0
          %vm776 = vcmask 1041408
          %v778 = vsel %vm776, %v767, 0
          %780 = vmatpush.msra.mxu0 0.0
          %781 = vmatpush.msra.mxu0 0.0
          %782 = vmatpush.msra.mxu0 0.0
          %783 = vmatpush.msra.mxu0 0.0
          %784 = vmatpush.msra.mxu0 0.0
          %785 = vmatpush.msra.mxu0 0.0
          %786 = vmatpush.msra.mxu0 0.0
          %787 = vmatpush.msra.mxu0 0.0
          %788 = vmatpush.msra.mxu0 0.0
          %789 = vmatpush.msra.mxu0 0.0
          %790 = vmatpush.msra.mxu0 0.0
          %791 = vmatpush.msra.mxu0 0.0
          %792 = vmatpush.msra.mxu0 0.0
          %793 = vmatpush.msra.mxu0 0.0
          %794 = vmatpush.msra.mxu0 0.0
          %795 = vmatpush.msra.mxu0 %v778
          %796 = vmatmul.f32.gmra.mxu0 %v774
          %v797 = vpop.f32.mrf.mxu0
          %v798 = vadd.f32 %v770, %v797
          %799 = vdwg.mxu0
          %v800 = vtanh.pop %v798
          %v801 = vld [vmem:[%s5] sm:$0xff]
          %v802 = vld [vmem:[%s5 + $0x8] sm:$0xff]
          %v803 = vld [vmem:[%s5 + $0x10] sm:$0xff]
          %v804 = vld [vmem:[%s5 + $0x18] sm:$0xff]
          %v805 = vld [vmem:[%s6] sm:$0x3]
          %v807 = vsel %vm776, %v805, 0
          %809 = vmatpush.msra.mxu0 0.0
          %810 = vmatpush.msra.mxu0 0.0
          %811 = vmatpush.msra.mxu0 0.0
          %812 = vmatpush.msra.mxu0 0.0
          %813 = vmatpush.msra.mxu0 0.0
          %814 = vmatpush.msra.mxu0 0.0
          %815 = vmatpush.msra.mxu0 0.0
          %816 = vmatpush.msra.mxu0 0.0
          %817 = vmatpush.msra.mxu0 0.0
          %818 = vmatpush.msra.mxu0 0.0
          %819 = vmatpush.msra.mxu0 0.0
          %820 = vmatpush.msra.mxu0 0.0
          %821 = vmatpush.msra.mxu0 0.0
          %822 = vmatpush.msra.mxu0 0.0
          %823 = vmatpush.msra.mxu0 0.0
          %824 = vmatpush.msra.mxu0 %v807
          %825 = vmatmul.f32.gmra.mxu0 %v774
          %v826 = vpop.f32.mrf.mxu0
          %v827 = vadd.f32 0.0, %v826
          %828 = vdwg.mxu0
          %vm829 = vcmask 261120
          %v831 = vsel %vm829, %v800, 0
          %833 = vmatpush.msra.mxu0 0.0
          %834 = vmatpush.msra.mxu0 0.0
          %835 = vmatpush.msra.mxu0 0.0
          %836 = vmatpush.msra.mxu0 0.0
          %837 = vmatpush.msra.mxu0 0.0
          %838 = vmatpush.msra.mxu0 0.0
          %839 = vmatpush.msra.mxu0 0.0
          %840 = vmatpush.msra.mxu0 0.0
          %841 = vmatpush.msra.mxu0 0.0
          %842 = vmatpush.msra.mxu0 0.0
          %843 = vmatpush.msra.mxu0 0.0
          %844 = vmatpush.msra.mxu0 0.0
          %845 = vmatpush.msra.mxu0 %v804
          %846 = vmatpush.msra.mxu0 %v803
          %847 = vmatpush.msra.mxu0 %v802
          %848 = vmatpush.msra.mxu0 %v801
          %849 = vmatmul.f32.gmra.mxu0 %v831
          %v850 = vpop.f32.mrf.mxu0
          %v851 = vadd.f32 %v827, %v850
          %852 = vdwg.mxu0
          %v853 = vld [vmem:[#allocation15] sm:$0x1]
          %v855 = vperm.slane %v853, 0
          %v857 = vadd.f32 %v851, %v855
          %858 = vst.msk [vmem:[#allocation2] sm:$0xff] %vm829, %v857
          %v859 = vld [vmem:[#allocation17] sm:$0xff]
          %v860 = vld [vmem:[#allocation17 + $0x8] sm:$0xff]
          %v861 = vld [vmem:[#allocation17 + $0x10] sm:$0xff]
          %v862 = vld [vmem:[#allocation17 + $0x18] sm:$0xff]
          %v863 = vld [vmem:[%s9] sm:$0x3]
          %v865 = vsel %vm776, %v863, 0
          %867 = vmatpush.msra.mxu0 0.0
          %868 = vmatpush.msra.mxu0 0.0
          %869 = vmatpush.msra.mxu0 0.0
          %870 = vmatpush.msra.mxu0 0.0
          %871 = vmatpush.msra.mxu0 0.0
          %872 = vmatpush.msra.mxu0 0.0
          %873 = vmatpush.msra.mxu0 0.0
          %874 = vmatpush.msra.mxu0 0.0
          %875 = vmatpush.msra.mxu0 0.0
          %876 = vmatpush.msra.mxu0 0.0
          %877 = vmatpush.msra.mxu0 0.0
          %878 = vmatpush.msra.mxu0 0.0
          %879 = vmatpush.msra.mxu0 0.0
          %880 = vmatpush.msra.mxu0 0.0
          %881 = vmatpush.msra.mxu0 0.0
          %882 = vmatpush.msra.mxu0 %v865
          %883 = vmatmul.f32.gmra.mxu0 %v774
          %v884 = vpop.f32.mrf.mxu0
          %v885 = vadd.f32 0.0, %v884
          %886 = vdwg.mxu0
          %887 = vmatpush.msra.mxu0 0.0
          %888 = vmatpush.msra.mxu0 0.0
          %889 = vmatpush.msra.mxu0 0.0
          %890 = vmatpush.msra.mxu0 0.0
          %891 = vmatpush.msra.mxu0 0.0
          %892 = vmatpush.msra.mxu0 0.0
          %893 = vmatpush.msra.mxu0 0.0
          %894 = vmatpush.msra.mxu0 0.0
          %895 = vmatpush.msra.mxu0 0.0
          %896 = vmatpush.msra.mxu0 0.0
          %897 = vmatpush.msra.mxu0 0.0
          %898 = vmatpush.msra.mxu0 0.0
          %899 = vmatpush.msra.mxu0 %v862
          %900 = vmatpush.msra.mxu0 %v861
          %901 = vmatpush.msra.mxu0 %v860
          %902 = vmatpush.msra.mxu0 %v859
          %903 = vmatmul.f32.gmra.mxu0 %v831
          %v904 = vpop.f32.mrf.mxu0
          %v905 = vadd.f32 %v885, %v904
          %906 = vdwg.mxu0
          %907 = vst.msk [vmem:[#allocation3] sm:$0xff] %vm829, %v905
          %v908 = vld [vmem:[%s2] sm:$0xff]
          %v909 = vld [vmem:[#allocation18] sm:$0xff]
          %v910 = vld [vmem:[#allocation18 + $0x8] sm:$0xff]
          %v911 = vld [vmem:[#allocation18 + $0x10] sm:$0xff]
          %v912 = vld [vmem:[#allocation18 + $0x18] sm:$0xff]
          %v913 = vld [vmem:[%s14] sm:$0x3]
          %v915 = vsel %vm772, %v908, 0
          %v918 = vsel %vm776, %v913, 0
          %920 = vmatpush.msra.mxu0 0.0
          %921 = vmatpush.msra.mxu0 0.0
          %922 = vmatpush.msra.mxu0 0.0
          %923 = vmatpush.msra.mxu0 0.0
          %924 = vmatpush.msra.mxu0 0.0
          %925 = vmatpush.msra.mxu0 0.0
          %926 = vmatpush.msra.mxu0 0.0
          %927 = vmatpush.msra.mxu0 0.0
          %928 = vmatpush.msra.mxu0 0.0
          %929 = vmatpush.msra.mxu0 0.0
          %930 = vmatpush.msra.mxu0 0.0
          %931 = vmatpush.msra.mxu0 0.0
          %932 = vmatpush.msra.mxu0 0.0
          %933 = vmatpush.msra.mxu0 0.0
          %934 = vmatpush.msra.mxu0 0.0
          %935 = vmatpush.msra.mxu0 %v918
          %936 = vmatmul.f32.gmra.mxu0 %v915
          %v937 = vpop.f32.mrf.mxu0
          %v938 = vadd.f32 0.0, %v937
          %939 = vdwg.mxu0
          %940 = vmatpush.msra.mxu0 0.0
          %941 = vmatpush.msra.mxu0 0.0
          %942 = vmatpush.msra.mxu0 0.0
          %943 = vmatpush.msra.mxu0 0.0
          %944 = vmatpush.msra.mxu0 0.0
          %945 = vmatpush.msra.mxu0 0.0
          %946 = vmatpush.msra.mxu0 0.0
          %947 = vmatpush.msra.mxu0 0.0
          %948 = vmatpush.msra.mxu0 0.0
          %949 = vmatpush.msra.mxu0 0.0
          %950 = vmatpush.msra.mxu0 0.0
          %951 = vmatpush.msra.mxu0 0.0
          %952 = vmatpush.msra.mxu0 %v912
          %953 = vmatpush.msra.mxu0 %v911
          %954 = vmatpush.msra.mxu0 %v910
          %955 = vmatpush.msra.mxu0 %v909
          %956 = vmatmul.f32.gmra.mxu0 %v831
          %v957 = vpop.f32.mrf.mxu0
          %v958 = vadd.f32 %v938, %v957
          %959 = vdwg.mxu0
          %960 = vst.msk [vmem:[#allocation4] sm:$0xff] %vm829, %v958
          %v961 = vld [vmem:[#allocation20] sm:$0xff]
          %v962 = vld [vmem:[#allocation20 + $0x8] sm:$0xff]
          %v963 = vld [vmem:[#allocation20 + $0x10] sm:$0xff]
          %v964 = vld [vmem:[#allocation20 + $0x18] sm:$0xff]
          %v965 = vld [vmem:[%s16] sm:$0x3]
          %v967 = vsel %vm776, %v965, 0
          %969 = vmatpush.msra.mxu0 0.0
          %970 = vmatpush.msra.mxu0 0.0
          %971 = vmatpush.msra.mxu0 0.0
          %972 = vmatpush.msra.mxu0 0.0
          %973 = vmatpush.msra.mxu0 0.0
          %974 = vmatpush.msra.mxu0 0.0
          %975 = vmatpush.msra.mxu0 0.0
          %976 = vmatpush.msra.mxu0 0.0
          %977 = vmatpush.msra.mxu0 0.0
          %978 = vmatpush.msra.mxu0 0.0
          %979 = vmatpush.msra.mxu0 0.0
          %980 = vmatpush.msra.mxu0 0.0
          %981 = vmatpush.msra.mxu0 0.0
          %982 = vmatpush.msra.mxu0 0.0
          %983 = vmatpush.msra.mxu0 0.0
          %984 = vmatpush.msra.mxu0 %v967
          %985 = vmatmul.f32.gmra.mxu0 %v915
          %v986 = vpop.f32.mrf.mxu0
          %v987 = vadd.f32 0.0, %v986
          %988 = vdwg.mxu0
          %989 = vmatpush.msra.mxu0 0.0
          %990 = vmatpush.msra.mxu0 0.0
          %991 = vmatpush.msra.mxu0 0.0
          %992 = vmatpush.msra.mxu0 0.0
          %993 = vmatpush.msra.mxu0 0.0
          %994 = vmatpush.msra.mxu0 0.0
          %995 = vmatpush.msra.mxu0 0.0
          %996 = vmatpush.msra.mxu0 0.0
          %997 = vmatpush.msra.mxu0 0.0
          %998 = vmatpush.msra.mxu0 0.0
          %999 = vmatpush.msra.mxu0 0.0
          %1000 = vmatpush.msra.mxu0 0.0
          %1001 = vmatpush.msra.mxu0 %v964
          %1002 = vmatpush.msra.mxu0 %v963
          %1003 = vmatpush.msra.mxu0 %v962
          %1004 = vmatpush.msra.mxu0 %v961
          %1005 = vmatmul.f32.gmra.mxu0 %v831
          %v1006 = vpop.f32.mrf.mxu0
          %v1007 = vadd.f32 %v987, %v1006
          %1008 = vdwg.mxu0
          %1009 = vst.msk [vmem:[#allocation5] sm:$0xff] %vm829, %v1007
          %v1010 = vld [vmem:[#allocation21] sm:$0xff]
          %v1011 = vld [vmem:[#allocation21 + $0x8] sm:$0xff]
          %v1012 = vld [vmem:[#allocation21 + $0x10] sm:$0xff]
          %v1013 = vld [vmem:[#allocation21 + $0x18] sm:$0xff]
          %v1014 = vld [vmem:[%s18] sm:$0x3]
          %v1016 = vsel %vm776, %v1014, 0
          %1018 = vmatpush.msra.mxu0 0.0
          %1019 = vmatpush.msra.mxu0 0.0
          %1020 = vmatpush.msra.mxu0 0.0
          %1021 = vmatpush.msra.mxu0 0.0
          %1022 = vmatpush.msra.mxu0 0.0
          %1023 = vmatpush.msra.mxu0 0.0
          %1024 = vmatpush.msra.mxu0 0.0
          %1025 = vmatpush.msra.mxu0 0.0
          %1026 = vmatpush.msra.mxu0 0.0
          %1027 = vmatpush.msra.mxu0 0.0
          %1028 = vmatpush.msra.mxu0 0.0
          %1029 = vmatpush.msra.mxu0 0.0
          %1030 = vmatpush.msra.mxu0 0.0
          %1031 = vmatpush.msra.mxu0 0.0
          %1032 = vmatpush.msra.mxu0 0.0
          %1033 = vmatpush.msra.mxu0 %v1016
          %1034 = vmatmul.f32.gmra.mxu0 %v915
          %v1035 = vpop.f32.mrf.mxu0
          %v1036 = vadd.f32 0.0, %v1035
          %1037 = vdwg.mxu0
          %1038 = vmatpush.msra.mxu0 0.0
          %1039 = vmatpush.msra.mxu0 0.0
          %1040 = vmatpush.msra.mxu0 0.0
          %1041 = vmatpush.msra.mxu0 0.0
          %1042 = vmatpush.msra.mxu0 0.0
          %1043 = vmatpush.msra.mxu0 0.0
          %1044 = vmatpush.msra.mxu0 0.0
          %1045 = vmatpush.msra.mxu0 0.0
          %1046 = vmatpush.msra.mxu0 0.0
          %1047 = vmatpush.msra.mxu0 0.0
          %1048 = vmatpush.msra.mxu0 0.0
          %1049 = vmatpush.msra.mxu0 0.0
          %1050 = vmatpush.msra.mxu0 %v1013
          %1051 = vmatpush.msra.mxu0 %v1012
          %1052 = vmatpush.msra.mxu0 %v1011
          %1053 = vmatpush.msra.mxu0 %v1010
          %1054 = vmatmul.f32.gmra.mxu0 %v831
          %v1055 = vpop.f32.mrf.mxu0
          %v1056 = vadd.f32 %v1036, %v1055
          %1057 = vdwg.mxu0
          %v1058 = vld [vmem:[%s19] sm:$0x1]
          %v1060 = vperm.slane %v1058, 0
          %v1062 = vadd.f32 %v1056, %v1060
          %1063 = vst.msk [vmem:[#allocation6] sm:$0xff] %vm829, %v1062
          %1064 = vst.msk [vmem:[#allocation7] sm:$0xff] %vm829, 0.0
          %1065 = vst.msk [vmem:[#allocation8] sm:$0xff] %vm829, 0.0
        $region132: #{tpu_custom_call.1} parent=99 // pred_fallthru
          _
        %p1066 = scmp.lt.s32.totalorder %s55, 1
        // Predicated region
        $region133: #{tpu_custom_call.1} parent=99 // pred_check
          %p1067 = pneg %p1066
        $region134: #{tpu_custom_call.1} parent=99 // pred_check_branch
          %1069 = sbr.rel (%p1067) target = $region136
        $region135: #{tpu_custom_call.1} parent=99 // pred_region
          %s1070 = smul.u32 %s55, 16
          loop: start=0, step=1, limit=16
          $region137: #{tpu_custom_call.1} parent=135 // loop_pre_header
            _
          $region138: #{tpu_custom_call.1} parent=135 // loop_header
            %s1072 = sphi 0, %s1076
            %p1073 = scmp.ge.s32.totalorder %s1072, 16
          $region139: #{tpu_custom_call.1} parent=135 // loop_header_branch
            %1075 = sbr.rel (%p1073) target = $region143
          $region140: #{tpu_custom_call.1} parent=135 // loop_body
            %s1077 = sadd.s32 %s1070, %s1072
            %s1078 = sld [smem:[#allocation11 + %s1077]]
            %s1079 = sld [smem:[#allocation12 + %s1077]]
            %s1080 = scalar_lea.vmem [#allocation2], %s1079
            %v1081 = vld [vmem:[%s1080] sm:$0x1]
            %s1082 = scalar_lea.vmem [#allocation3], %s1078
            %v1083 = vld [vmem:[%s1082] sm:$0x1]
            %v1084 = vadd.f32 %v1081, %v1083
            %s1085 = scalar_lea.vmem [#allocation9], %s1072
            %vm1086 = vcmask 253952
            %1087 = vst.msk [vmem:[%s1085] sm:$0x1] %vm1086, %v1084
          $region141: #{tpu_custom_call.1} parent=135 // loop_footer
            %s1076 = sadd.s32 1, %s1072
          $region142: #{tpu_custom_call.1} parent=135 // loop_footer_branch
            %1071 = sbr.rel target = $region138
          $region143: #{tpu_custom_call.1} parent=135 // loop_exit
            _
          %v1088 = vld [vmem:[#allocation9] sm:$0xff]
          %v1089 = vld [vmem:[#allocation9 + $0x8] sm:$0xff]
          %v1090 = vtanh.pop %v1088
          %v1091 = vtanh.pop %v1089
          %v1092 = vld [vmem:[%s10] sm:$0xff]
          %v1093 = vld [vmem:[%s10 + $0x8] sm:$0xff]
          %v1094 = vld [vmem:[%s10 + $0x10] sm:$0xff]
          %v1095 = vld [vmem:[%s10 + $0x18] sm:$0xff]
          %v1096 = vld [vmem:[%s11] sm:$0x1]
          %v1098 = vperm.slane %v1096, 0
          %vm1100 = vcmask 261120
          %v1102 = vsel %vm1100, %v1090, 0
          %v1105 = vsel %vm1100, %v1091, 0
          %1107 = vmatpush.msra.mxu0 0.0
          %1108 = vmatpush.msra.mxu0 0.0
          %1109 = vmatpush.msra.mxu0 0.0
          %1110 = vmatpush.msra.mxu0 0.0
          %1111 = vmatpush.msra.mxu0 0.0
          %1112 = vmatpush.msra.mxu0 0.0
          %1113 = vmatpush.msra.mxu0 0.0
          %1114 = vmatpush.msra.mxu0 0.0
          %1115 = vmatpush.msra.mxu0 0.0
          %1116 = vmatpush.msra.mxu0 0.0
          %1117 = vmatpush.msra.mxu0 0.0
          %1118 = vmatpush.msra.mxu0 0.0
          %1119 = vmatpush.msra.mxu0 %v1095
          %1120 = vmatpush.msra.mxu0 %v1094
          %1121 = vmatpush.msra.mxu0 %v1093
          %1122 = vmatpush.msra.mxu0 %v1092
          %1123 = vmatmul.f32.gmra.mxu0 %v1102
          %v1124 = vpop.f32.mrf.mxu0
          %v1125 = vadd.f32 %v1098, %v1124
          %1126 = vmatmul.f32.gmra.mxu0 %v1105
          %v1127 = vpop.f32.mrf.mxu0
          %v1128 = vadd.f32 %v1098, %v1127
          %1129 = vdwg.mxu0
          %v1130 = vtanh.pop %v1125
          %v1131 = vtanh.pop %v1128
          %vm1132 = vcmask 31744
          %v1133 = vsel %vm1132, %v1130, -inf
          %1134 = vmax.xlane.f32.xlu0 %v1133
          %v1135 = vpop.xlane.xlu0 %1134
          %v1136 = vsel %vm1132, %v1131, -inf
          %1137 = vmax.xlane.f32.xlu0 %v1136
          %v1138 = vpop.xlane.xlu0 %1137
          %v1139 = vsub.f32 %v1130, %v1135
          %v1140 = vsub.f32 %v1131, %v1138
          %v1141 = vmul.f32 %v1139, 1.442695
          %v1142 = vpow.pop %v1141
          %v1143 = vmul.f32 %v1140, 1.442695
          %v1144 = vpow.pop %v1143
          %v1145 = vsel %vm1132, %v1142, 0.0
          %1146 = vadd.xlane.f32.xlu0 %v1145
          %v1147 = vpop.xlane.xlu0 %1146
          %v1148 = vsel %vm1132, %v1144, 0.0
          %1149 = vadd.xlane.f32.xlu0 %v1148
          %v1150 = vpop.xlane.xlu0 %1149
          %v1151 = vrcp.pop %v1147
          %v1152 = vmul.f32 %v1147, %v1151
          %v1153 = vsub.f32 1.0, %v1152
          %v1154 = vmul.f32 %v1151, %v1153
          %v1155 = vadd.f32 %v1151, %v1154
          %vm1156 = vweird.f32 %v1147
          %vm1157 = vweird.f32 %v1151
          %vm1158 = vmor %vm1156, %vm1157
          %v1159 = vsel %vm1158, %v1151, %v1155
          %v1160 = vand.u32 2147483647, %v1147
          %vm1161 = vcmp.eq.f32.partialorder %v1160, 8.507059e+37
          %v1162 = vand.u32 %v1147, 2147483648
          %v1163 = vor.u32 1.1754944e-38, %v1162
          %v1164 = vsel %vm1161, %v1163, %v1159
          %v1165 = vrcp.pop %v1150
          %v1166 = vmul.f32 %v1150, %v1165
          %v1167 = vsub.f32 1.0, %v1166
          %v1168 = vmul.f32 %v1165, %v1167
          %v1169 = vadd.f32 %v1165, %v1168
          %vm1170 = vweird.f32 %v1150
          %vm1171 = vweird.f32 %v1165
          %vm1172 = vmor %vm1170, %vm1171
          %v1173 = vsel %vm1172, %v1165, %v1169
          %v1174 = vand.u32 2147483647, %v1150
          %vm1175 = vcmp.eq.f32.partialorder %v1174, 8.507059e+37
          %v1176 = vand.u32 %v1150, 2147483648
          %v1177 = vor.u32 1.1754944e-38, %v1176
          %v1178 = vsel %vm1175, %v1177, %v1173
          %v1179 = vmul.f32 %v1142, %v1164
          %v1180 = vmul.f32 %v1144, %v1178
          %1181 = vst.msk [vmem:[%s756] sm:$0xff] %vm1132, %v1179
          %1182 = vst.msk [vmem:[%s756 + $0x8] sm:$0xff] %vm1132, %v1180
          %v1183 = vld [vmem:[%s12] sm:$0xf]
          %v1185 = vsel %vm1132, %v1179, 0
          %v1188 = vsel %vm1132, %v1180, 0
          %vm1190 = vcmask 1043456
          %v1192 = vsel %vm1190, %v1183, 0
          %1194 = vmatpush.msra.mxu0 0.0
          %1195 = vmatpush.msra.mxu0 0.0
          %1196 = vmatpush.msra.mxu0 0.0
          %1197 = vmatpush.msra.mxu0 0.0
          %1198 = vmatpush.msra.mxu0 0.0
          %1199 = vmatpush.msra.mxu0 0.0
          %1200 = vmatpush.msra.mxu0 0.0
          %1201 = vmatpush.msra.mxu0 0.0
          %1202 = vmatpush.msra.mxu0 0.0
          %1203 = vmatpush.msra.mxu0 0.0
          %1204 = vmatpush.msra.mxu0 0.0
          %1205 = vmatpush.msra.mxu0 0.0
          %1206 = vmatpush.msra.mxu0 0.0
          %1207 = vmatpush.msra.mxu0 0.0
          %1208 = vmatpush.msra.mxu0 0.0
          %1209 = vmatpush.msra.mxu0 %v1192
          %1210 = vmatmul.f32.gmra.mxu0 %v1185
          %v1211 = vpop.f32.mrf.mxu0
          %v1212 = vadd.f32 0.0, %v1211
          %1213 = vmatmul.f32.gmra.mxu0 %v1188
          %v1214 = vpop.f32.mrf.mxu0
          %v1215 = vadd.f32 0.0, %v1214
          %1216 = vdwg.mxu0
          %1217 = vst.msk [vmem:[#allocation9] sm:$0xff] %vm1100, %v1212
          %1218 = vst.msk [vmem:[#allocation9 + $0x8] sm:$0xff] %vm1100, %v1215
          %p1219 = scmp.lt.s32.totalorder %s54, 3
          // Predicated region
          $region144: #{tpu_custom_call.1} parent=135 // pred_check
            %p1220 = pneg %p1219
          $region145: #{tpu_custom_call.1} parent=135 // pred_check_branch
            %1222 = sbr.rel (%p1220) target = $region147
          $region146: #{tpu_custom_call.1} parent=135 // pred_region
            loop: start=0, step=1, limit=16
            $region148: #{tpu_custom_call.1} parent=146 // loop_pre_header
              _
            $region149: #{tpu_custom_call.1} parent=146 // loop_header
              %s1224 = sphi 0, %s1228
              %p1225 = scmp.ge.s32.totalorder %s1224, 16
            $region150: #{tpu_custom_call.1} parent=146 // loop_header_branch
              %1227 = sbr.rel (%p1225) target = $region154
            $region151: #{tpu_custom_call.1} parent=146 // loop_body
              %s1229 = sadd.s32 %s1070, %s1224
              %p1230 = scmp.lt.s32.totalorder %s1229, 16
              // Predicated region
              $region155: #{tpu_custom_call.1} parent=151 // pred_check
                %p1231 = pneg %p1230
              $region156: #{tpu_custom_call.1} parent=151 // pred_check_branch
                %1233 = sbr.rel (%p1231) target = $region158
              $region157: #{tpu_custom_call.1} parent=151 // pred_region
                %s1234 = sld [smem:[#allocation11 + %s1229]]
                %s1235 = sld [smem:[#allocation12 + %s1229]]
                %s1236 = scalar_lea.vmem [#allocation9], %s1224
                %v1237 = vld [vmem:[%s1236] sm:$0x1]
                %s1238 = scalar_lea.vmem [#allocation7], %s1235
                %v1239 = vld [vmem:[%s1238] sm:$0x1]
                %s1240 = scalar_lea.vmem [#allocation4], %s1234
                %v1241 = vld [vmem:[%s1240] sm:$0x1]
                %v1242 = vmul.f32 %v1237, %v1241
                %v1243 = vadd.f32 %v1239, %v1242
                %vm1244 = vcmask 253952
                %1245 = vst.msk [vmem:[%s1238] sm:$0x1] %vm1244, %v1243
                %s1246 = scalar_lea.vmem [#allocation8], %s1234
                %v1247 = vld [vmem:[%s1246] sm:$0x1]
                %s1248 = scalar_lea.vmem [#allocation5], %s1235
                %v1249 = vld [vmem:[%s1248] sm:$0x1]
                %v1250 = vmul.f32 %v1237, %v1249
                %v1251 = vadd.f32 %v1247, %v1250
                %1252 = vst.msk [vmem:[%s1246] sm:$0x1] %vm1244, %v1251
              $region158: #{tpu_custom_call.1} parent=151 // pred_fallthru
                _
            $region152: #{tpu_custom_call.1} parent=146 // loop_footer
              %s1228 = sadd.s32 1, %s1224
            $region153: #{tpu_custom_call.1} parent=146 // loop_footer_branch
              %1223 = sbr.rel target = $region149
            $region154: #{tpu_custom_call.1} parent=146 // loop_exit
              _
          $region147: #{tpu_custom_call.1} parent=135 // pred_fallthru
            _
        $region136: #{tpu_custom_call.1} parent=99 // pred_fallthru
          _
        %p1253 = scmp.eq.s32.totalorder %s55, 1
        %p1254 = scmp.lt.s32.totalorder %s54, 3
        %p1255 = pnand %p1253, %p1254
        %p1256 = pneg %p1255
        // Predicated region
        $region159: #{tpu_custom_call.1} parent=99 // pred_check
          _
        $region160: #{tpu_custom_call.1} parent=99 // pred_check_branch
          %1258 = sbr.rel (%p1255) target = $region162
        $region161: #{tpu_custom_call.1} parent=99 // pred_region
          %v1259 = vld [vmem:[#allocation7] sm:$0xff]
          %v1260 = vld [vmem:[#allocation8] sm:$0xff]
          %v1261 = vadd.f32 %v1259, %v1260
          %v1262 = vld [vmem:[#allocation6] sm:$0xff]
          %v1263 = vadd.f32 %v1261, %v1262
          %v1264 = vtanh.pop %v1263
          %v1265 = vld [vmem:[#allocation23] sm:$0xff]
          %v1266 = vld [vmem:[#allocation23 + $0x8] sm:$0xff]
          %v1267 = vld [vmem:[#allocation23 + $0x10] sm:$0xff]
          %v1268 = vld [vmem:[#allocation23 + $0x18] sm:$0xff]
          %v1269 = vld [vmem:[%s21] sm:$0x1]
          %v1271 = vperm.slane %v1269, 0
          %vm1273 = vcmask 261120
          %v1275 = vsel %vm1273, %v1264, 0
          %1277 = vmatpush.msra.mxu0 0.0
          %1278 = vmatpush.msra.mxu0 0.0
          %1279 = vmatpush.msra.mxu0 0.0
          %1280 = vmatpush.msra.mxu0 0.0
          %1281 = vmatpush.msra.mxu0 0.0
          %1282 = vmatpush.msra.mxu0 0.0
          %1283 = vmatpush.msra.mxu0 0.0
          %1284 = vmatpush.msra.mxu0 0.0
          %1285 = vmatpush.msra.mxu0 0.0
          %1286 = vmatpush.msra.mxu0 0.0
          %1287 = vmatpush.msra.mxu0 0.0
          %1288 = vmatpush.msra.mxu0 0.0
          %1289 = vmatpush.msra.mxu0 %v1268
          %1290 = vmatpush.msra.mxu0 %v1267
          %1291 = vmatpush.msra.mxu0 %v1266
          %1292 = vmatpush.msra.mxu0 %v1265
          %1293 = vmatmul.f32.gmra.mxu0 %v1275
          %v1294 = vpop.f32.mrf.mxu0
          %v1295 = vadd.f32 %v1271, %v1294
          %1296 = vdwg.mxu0
          %v1297 = vtanh.pop %v1295
          %v1298 = vld [vmem:[%s2] sm:$0xff]
          %v1299 = vld [vmem:[%s5] sm:$0xff]
          %v1300 = vld [vmem:[%s5 + $0x8] sm:$0xff]
          %v1301 = vld [vmem:[%s5 + $0x10] sm:$0xff]
          %v1302 = vld [vmem:[%s5 + $0x18] sm:$0xff]
          %v1303 = vld [vmem:[%s6] sm:$0x3]
          %vm1304 = vcmask 15360
          %v1306 = vsel %vm1304, %v1298, 0
          %vm1308 = vcmask 1041408
          %v1310 = vsel %vm1308, %v1303, 0
          %1312 = vmatpush.msra.mxu0 0.0
          %1313 = vmatpush.msra.mxu0 0.0
          %1314 = vmatpush.msra.mxu0 0.0
          %1315 = vmatpush.msra.mxu0 0.0
          %1316 = vmatpush.msra.mxu0 0.0
          %1317 = vmatpush.msra.mxu0 0.0
          %1318 = vmatpush.msra.mxu0 0.0
          %1319 = vmatpush.msra.mxu0 0.0
          %1320 = vmatpush.msra.mxu0 0.0
          %1321 = vmatpush.msra.mxu0 0.0
          %1322 = vmatpush.msra.mxu0 0.0
          %1323 = vmatpush.msra.mxu0 0.0
          %1324 = vmatpush.msra.mxu0 0.0
          %1325 = vmatpush.msra.mxu0 0.0
          %1326 = vmatpush.msra.mxu0 0.0
          %1327 = vmatpush.msra.mxu0 %v1310
          %1328 = vmatmul.f32.gmra.mxu0 %v1306
          %v1329 = vpop.f32.mrf.mxu0
          %v1330 = vadd.f32 0.0, %v1329
          %1331 = vdwg.mxu0
          %v1333 = vsel %vm1273, %v1297, 0
          %1335 = vmatpush.msra.mxu0 0.0
          %1336 = vmatpush.msra.mxu0 0.0
          %1337 = vmatpush.msra.mxu0 0.0
          %1338 = vmatpush.msra.mxu0 0.0
          %1339 = vmatpush.msra.mxu0 0.0
          %1340 = vmatpush.msra.mxu0 0.0
          %1341 = vmatpush.msra.mxu0 0.0
          %1342 = vmatpush.msra.mxu0 0.0
          %1343 = vmatpush.msra.mxu0 0.0
          %1344 = vmatpush.msra.mxu0 0.0
          %1345 = vmatpush.msra.mxu0 0.0
          %1346 = vmatpush.msra.mxu0 0.0
          %1347 = vmatpush.msra.mxu0 %v1302
          %1348 = vmatpush.msra.mxu0 %v1301
          %1349 = vmatpush.msra.mxu0 %v1300
          %1350 = vmatpush.msra.mxu0 %v1299
          %1351 = vmatmul.f32.gmra.mxu0 %v1333
          %v1352 = vpop.f32.mrf.mxu0
          %v1353 = vadd.f32 %v1330, %v1352
          %1354 = vdwg.mxu0
          %v1355 = vld [vmem:[#allocation15] sm:$0x1]
          %v1357 = vperm.slane %v1355, 0
          %v1359 = vadd.f32 %v1353, %v1357
          %1360 = vst.msk [vmem:[#allocation2] sm:$0xff] %vm1273, %v1359
          %v1361 = vld [vmem:[#allocation17] sm:$0xff]
          %v1362 = vld [vmem:[#allocation17 + $0x8] sm:$0xff]
          %v1363 = vld [vmem:[#allocation17 + $0x10] sm:$0xff]
          %v1364 = vld [vmem:[#allocation17 + $0x18] sm:$0xff]
          %v1365 = vld [vmem:[%s9] sm:$0x3]
          %v1367 = vsel %vm1308, %v1365, 0
          %1369 = vmatpush.msra.mxu0 0.0
          %1370 = vmatpush.msra.mxu0 0.0
          %1371 = vmatpush.msra.mxu0 0.0
          %1372 = vmatpush.msra.mxu0 0.0
          %1373 = vmatpush.msra.mxu0 0.0
          %1374 = vmatpush.msra.mxu0 0.0
          %1375 = vmatpush.msra.mxu0 0.0
          %1376 = vmatpush.msra.mxu0 0.0
          %1377 = vmatpush.msra.mxu0 0.0
          %1378 = vmatpush.msra.mxu0 0.0
          %1379 = vmatpush.msra.mxu0 0.0
          %1380 = vmatpush.msra.mxu0 0.0
          %1381 = vmatpush.msra.mxu0 0.0
          %1382 = vmatpush.msra.mxu0 0.0
          %1383 = vmatpush.msra.mxu0 0.0
          %1384 = vmatpush.msra.mxu0 %v1367
          %1385 = vmatmul.f32.gmra.mxu0 %v1306
          %v1386 = vpop.f32.mrf.mxu0
          %v1387 = vadd.f32 0.0, %v1386
          %1388 = vdwg.mxu0
          %1389 = vmatpush.msra.mxu0 0.0
          %1390 = vmatpush.msra.mxu0 0.0
          %1391 = vmatpush.msra.mxu0 0.0
          %1392 = vmatpush.msra.mxu0 0.0
          %1393 = vmatpush.msra.mxu0 0.0
          %1394 = vmatpush.msra.mxu0 0.0
          %1395 = vmatpush.msra.mxu0 0.0
          %1396 = vmatpush.msra.mxu0 0.0
          %1397 = vmatpush.msra.mxu0 0.0
          %1398 = vmatpush.msra.mxu0 0.0
          %1399 = vmatpush.msra.mxu0 0.0
          %1400 = vmatpush.msra.mxu0 0.0
          %1401 = vmatpush.msra.mxu0 %v1364
          %1402 = vmatpush.msra.mxu0 %v1363
          %1403 = vmatpush.msra.mxu0 %v1362
          %1404 = vmatpush.msra.mxu0 %v1361
          %1405 = vmatmul.f32.gmra.mxu0 %v1333
          %v1406 = vpop.f32.mrf.mxu0
          %v1407 = vadd.f32 %v1387, %v1406
          %1408 = vdwg.mxu0
          %1409 = vst.msk [vmem:[#allocation3] sm:$0xff] %vm1273, %v1407
          %p1410 = scmp.lt.s32.totalorder %s54, 2
          // Predicated region
          $region163: #{tpu_custom_call.1} parent=161 // pred_check
            %p1411 = pneg %p1410
          $region164: #{tpu_custom_call.1} parent=161 // pred_check_branch
            %1413 = sbr.rel (%p1411) target = $region166
          $region165: #{tpu_custom_call.1} parent=161 // pred_region
            %v1414 = vld [vmem:[%s2] sm:$0xff]
            %v1415 = vld [vmem:[#allocation18] sm:$0xff]
            %v1416 = vld [vmem:[#allocation18 + $0x8] sm:$0xff]
            %v1417 = vld [vmem:[#allocation18 + $0x10] sm:$0xff]
            %v1418 = vld [vmem:[#allocation18 + $0x18] sm:$0xff]
            %v1419 = vld [vmem:[%s14] sm:$0x3]
            %v1421 = vsel %vm1304, %v1414, 0
            %v1424 = vsel %vm1308, %v1419, 0
            %1426 = vmatpush.msra.mxu0 0.0
            %1427 = vmatpush.msra.mxu0 0.0
            %1428 = vmatpush.msra.mxu0 0.0
            %1429 = vmatpush.msra.mxu0 0.0
            %1430 = vmatpush.msra.mxu0 0.0
            %1431 = vmatpush.msra.mxu0 0.0
            %1432 = vmatpush.msra.mxu0 0.0
            %1433 = vmatpush.msra.mxu0 0.0
            %1434 = vmatpush.msra.mxu0 0.0
            %1435 = vmatpush.msra.mxu0 0.0
            %1436 = vmatpush.msra.mxu0 0.0
            %1437 = vmatpush.msra.mxu0 0.0
            %1438 = vmatpush.msra.mxu0 0.0
            %1439 = vmatpush.msra.mxu0 0.0
            %1440 = vmatpush.msra.mxu0 0.0
            %1441 = vmatpush.msra.mxu0 %v1424
            %1442 = vmatmul.f32.gmra.mxu0 %v1421
            %v1443 = vpop.f32.mrf.mxu0
            %v1444 = vadd.f32 0.0, %v1443
            %1445 = vdwg.mxu0
            %1446 = vmatpush.msra.mxu0 0.0
            %1447 = vmatpush.msra.mxu0 0.0
            %1448 = vmatpush.msra.mxu0 0.0
            %1449 = vmatpush.msra.mxu0 0.0
            %1450 = vmatpush.msra.mxu0 0.0
            %1451 = vmatpush.msra.mxu0 0.0
            %1452 = vmatpush.msra.mxu0 0.0
            %1453 = vmatpush.msra.mxu0 0.0
            %1454 = vmatpush.msra.mxu0 0.0
            %1455 = vmatpush.msra.mxu0 0.0
            %1456 = vmatpush.msra.mxu0 0.0
            %1457 = vmatpush.msra.mxu0 0.0
            %1458 = vmatpush.msra.mxu0 %v1418
            %1459 = vmatpush.msra.mxu0 %v1417
            %1460 = vmatpush.msra.mxu0 %v1416
            %1461 = vmatpush.msra.mxu0 %v1415
            %1462 = vmatmul.f32.gmra.mxu0 %v1333
            %v1463 = vpop.f32.mrf.mxu0
            %v1464 = vadd.f32 %v1444, %v1463
            %1465 = vdwg.mxu0
            %1466 = vst.msk [vmem:[#allocation4] sm:$0xff] %vm1273, %v1464
            %v1467 = vld [vmem:[#allocation20] sm:$0xff]
            %v1468 = vld [vmem:[#allocation20 + $0x8] sm:$0xff]
            %v1469 = vld [vmem:[#allocation20 + $0x10] sm:$0xff]
            %v1470 = vld [vmem:[#allocation20 + $0x18] sm:$0xff]
            %v1471 = vld [vmem:[%s16] sm:$0x3]
            %v1473 = vsel %vm1308, %v1471, 0
            %1475 = vmatpush.msra.mxu0 0.0
            %1476 = vmatpush.msra.mxu0 0.0
            %1477 = vmatpush.msra.mxu0 0.0
            %1478 = vmatpush.msra.mxu0 0.0
            %1479 = vmatpush.msra.mxu0 0.0
            %1480 = vmatpush.msra.mxu0 0.0
            %1481 = vmatpush.msra.mxu0 0.0
            %1482 = vmatpush.msra.mxu0 0.0
            %1483 = vmatpush.msra.mxu0 0.0
            %1484 = vmatpush.msra.mxu0 0.0
            %1485 = vmatpush.msra.mxu0 0.0
            %1486 = vmatpush.msra.mxu0 0.0
            %1487 = vmatpush.msra.mxu0 0.0
            %1488 = vmatpush.msra.mxu0 0.0
            %1489 = vmatpush.msra.mxu0 0.0
            %1490 = vmatpush.msra.mxu0 %v1473
            %1491 = vmatmul.f32.gmra.mxu0 %v1421
            %v1492 = vpop.f32.mrf.mxu0
            %v1493 = vadd.f32 0.0, %v1492
            %1494 = vdwg.mxu0
            %1495 = vmatpush.msra.mxu0 0.0
            %1496 = vmatpush.msra.mxu0 0.0
            %1497 = vmatpush.msra.mxu0 0.0
            %1498 = vmatpush.msra.mxu0 0.0
            %1499 = vmatpush.msra.mxu0 0.0
            %1500 = vmatpush.msra.mxu0 0.0
            %1501 = vmatpush.msra.mxu0 0.0
            %1502 = vmatpush.msra.mxu0 0.0
            %1503 = vmatpush.msra.mxu0 0.0
            %1504 = vmatpush.msra.mxu0 0.0
            %1505 = vmatpush.msra.mxu0 0.0
            %1506 = vmatpush.msra.mxu0 0.0
            %1507 = vmatpush.msra.mxu0 %v1470
            %1508 = vmatpush.msra.mxu0 %v1469
            %1509 = vmatpush.msra.mxu0 %v1468
            %1510 = vmatpush.msra.mxu0 %v1467
            %1511 = vmatmul.f32.gmra.mxu0 %v1333
            %v1512 = vpop.f32.mrf.mxu0
            %v1513 = vadd.f32 %v1493, %v1512
            %1514 = vdwg.mxu0
            %1515 = vst.msk [vmem:[#allocation5] sm:$0xff] %vm1273, %v1513
            %v1516 = vld [vmem:[#allocation21] sm:$0xff]
            %v1517 = vld [vmem:[#allocation21 + $0x8] sm:$0xff]
            %v1518 = vld [vmem:[#allocation21 + $0x10] sm:$0xff]
            %v1519 = vld [vmem:[#allocation21 + $0x18] sm:$0xff]
            %v1520 = vld [vmem:[%s18] sm:$0x3]
            %v1522 = vsel %vm1308, %v1520, 0
            %1524 = vmatpush.msra.mxu0 0.0
            %1525 = vmatpush.msra.mxu0 0.0
            %1526 = vmatpush.msra.mxu0 0.0
            %1527 = vmatpush.msra.mxu0 0.0
            %1528 = vmatpush.msra.mxu0 0.0
            %1529 = vmatpush.msra.mxu0 0.0
            %1530 = vmatpush.msra.mxu0 0.0
            %1531 = vmatpush.msra.mxu0 0.0
            %1532 = vmatpush.msra.mxu0 0.0
            %1533 = vmatpush.msra.mxu0 0.0
            %1534 = vmatpush.msra.mxu0 0.0
            %1535 = vmatpush.msra.mxu0 0.0
            %1536 = vmatpush.msra.mxu0 0.0
            %1537 = vmatpush.msra.mxu0 0.0
            %1538 = vmatpush.msra.mxu0 0.0
            %1539 = vmatpush.msra.mxu0 %v1522
            %1540 = vmatmul.f32.gmra.mxu0 %v1421
            %v1541 = vpop.f32.mrf.mxu0
            %v1542 = vadd.f32 0.0, %v1541
            %1543 = vdwg.mxu0
            %1544 = vmatpush.msra.mxu0 0.0
            %1545 = vmatpush.msra.mxu0 0.0
            %1546 = vmatpush.msra.mxu0 0.0
            %1547 = vmatpush.msra.mxu0 0.0
            %1548 = vmatpush.msra.mxu0 0.0
            %1549 = vmatpush.msra.mxu0 0.0
            %1550 = vmatpush.msra.mxu0 0.0
            %1551 = vmatpush.msra.mxu0 0.0
            %1552 = vmatpush.msra.mxu0 0.0
            %1553 = vmatpush.msra.mxu0 0.0
            %1554 = vmatpush.msra.mxu0 0.0
            %1555 = vmatpush.msra.mxu0 0.0
            %1556 = vmatpush.msra.mxu0 %v1519
            %1557 = vmatpush.msra.mxu0 %v1518
            %1558 = vmatpush.msra.mxu0 %v1517
            %1559 = vmatpush.msra.mxu0 %v1516
            %1560 = vmatmul.f32.gmra.mxu0 %v1333
            %v1561 = vpop.f32.mrf.mxu0
            %v1562 = vadd.f32 %v1542, %v1561
            %1563 = vdwg.mxu0
            %v1564 = vld [vmem:[%s19] sm:$0x1]
            %v1566 = vperm.slane %v1564, 0
            %v1568 = vadd.f32 %v1562, %v1566
            %1569 = vst.msk [vmem:[#allocation6] sm:$0xff] %vm1273, %v1568
            %1570 = vst.msk [vmem:[#allocation7] sm:$0xff] %vm1273, 0.0
            %1571 = vst.msk [vmem:[#allocation8] sm:$0xff] %vm1273, 0.0
          $region166: #{tpu_custom_call.1} parent=161 // pred_fallthru
            _
        $region162: #{tpu_custom_call.1} parent=99 // pred_fallthru
          _
        %p1572 = scmp.lt.s32.totalorder %s55, 0
        %s1573 = scalar_select %p1572, %s55, 0
        %s1574 = smul.u32 2, %s1573
        %p1575 = scmp.lt.s32.totalorder %s1574, 1
        %s1576 = scalar_select %p1575, %s1574, 1
        %s1577 = smul.addr %s1576, 8
        %s1578 = scalar_lea.vmem %s22, %s1577
        // Predicated region
        $region167: #{tpu_custom_call.1} parent=99 // pred_check
          %p1579 = pneg %p504
        $region168: #{tpu_custom_call.1} parent=99 // pred_check_branch
          %1581 = sbr.rel (%p1579) target = $region170
        $region169: #{tpu_custom_call.1} parent=99 // pred_region
          %p1582 = scmp.lt.s32.totalorder %s55, 0
          %s1583 = scalar_select %p1582, %s55, 0
          %s1584 = smul.u32 2, %s1583
        $region170: #{tpu_custom_call.1} parent=99 // pred_fallthru
          _
      $region100: #{tpu_custom_call.1} parent=5 // pred_fallthru
        _
      %p1585 = scmp.le.s32.totalorder 2, %s45
      // Predicated region
      $region171: #{tpu_custom_call.1} parent=5 // pred_check
        %p1586 = pneg %p1585
      $region172: #{tpu_custom_call.1} parent=5 // pred_check_branch
        %1588 = sbr.rel (%p1586) target = $region174
      $region173: #{tpu_custom_call.1} parent=5 // pred_region
        %s1589 = ssub.s32 %s45, 2
        // Predicated region
        $region175: #{tpu_custom_call.1} parent=173 // pred_check
          %p1590 = pneg %p510
        $region176: #{tpu_custom_call.1} parent=173 // pred_check_branch
          %1592 = sbr.rel (%p1590) target = $region178
        $region177: #{tpu_custom_call.1} parent=173 // pred_region
          %p1593 = scmp.lt.s32.totalorder %s57, 0
          %s1594 = scalar_select %p1593, %s57, 0
          %s1595 = smul.u32 2, %s1594
          %p1596 = scmp.lt.s32.totalorder %s1595, 1
          %s1597 = scalar_select %p1596, %s1595, 1
          %s1598 = smul.addr %s1597, 8
          %s1599 = scalar_lea.vmem %s22, %s1598
        $region178: #{tpu_custom_call.1} parent=173 // pred_fallthru
          _
      $region174: #{tpu_custom_call.1} parent=5 // pred_fallthru
        _
    $region6: #{tpu_custom_call.1} parent=1 // loop_footer
      %s49 = sadd.s32 1, %s45
    $region7: #{tpu_custom_call.1} parent=1 // loop_footer_branch
      %44 = sbr.rel target = $region3
    $region8: #{tpu_custom_call.1} parent=1 // loop_exit
      _
    %1600 = vsyncpa [#allocation14], 1
    %s1601 = scalar_lea.sflag [#allocation14], 1
    %1602 = vsyncpa %s1601, 1
    %1603 = vsyncpa [#allocation16], 1
    %1604 = vsyncpa [#allocation19], 1
    %1605 = vsyncpa [#allocation22], 1

</llo_original>
